<compile_context>
chip_gen: v7x
topology: tpu7x:2x2x1
jax: 0.10.0
libtpu: 0.0.40
codegen_flags: <defaults>
</compile_context>

<pallas_src>
import functools
import itertools

import jax
import jax.numpy as jnp
from jax.experimental import pallas as pl
from jax.experimental.pallas import tpu as pltpu

LN_EPS = 1e-5


def _merge_kernel(x_ref, g_ref, b_ref, w_ref, o_ref, *, dt, ht, w2, c2):
    """Fused gather + LayerNorm(8C) + Linear(8C->2C, no bias) for one tile.

    x_ref: (2*dt, 2*ht, w2, c2)  input slab; axes = ((d', d-phase) folded,
                                 (h', h-phase) folded, w', (w-phase, C) folded)
    g_ref: (4, 1, c2)            LayerNorm gamma, chunked by (d,h) phase pair
    b_ref: (4, 1, c2)            LayerNorm beta, same chunking
    w_ref: (4, c2, c2)           W^T (bf16), chunked over in-features
    o_ref: (dt, ht, w2, c2)      output tile
    """
    rows = dt * ht * w2
    inv_8c = 1.0 / (4.0 * c2)          # 8*C == 4*c2

    # Split the folded (d', d-phase) / (h', h-phase) axes; the (w-phase, C)
    # pair is already lane-contiguous.  Leading-dim reshape -> no relayout.
    xr = x_ref[...].reshape(dt, 2, ht, 2, w2, c2)

    # Gather the four (d-phase i, h-phase j) chunks as (rows, 2C) f32 slabs.
    chunks = []
    for i in range(2):
        for j in range(2):
            ch = xr[:, i, :, j, :, :].astype(jnp.float32)
            chunks.append(ch.reshape(rows, c2))

    # LayerNorm statistics over the full 8*C feature set (f32, centered).
    s = jnp.zeros((rows, 1), jnp.float32)
    for ch in chunks:
        s = s + jnp.sum(ch, axis=-1, keepdims=True)
    mu = s * inv_8c

    centered = []
    ss = jnp.zeros((rows, 1), jnp.float32)
    for ch in chunks:
        xc = ch - mu
        centered.append(xc)
        ss = ss + jnp.sum(xc * xc, axis=-1, keepdims=True)
    inv = jax.lax.rsqrt(ss * inv_8c + LN_EPS)

    # Normalize + project: 4 accumulated MXU matmuls (bf16 in, f32 acc) against
    # contiguous in-feature slices of W^T  ==  LN(8C) @ W^T.
    acc = jnp.zeros((rows, c2), jnp.float32)
    for m in range(4):
        y = centered[m] * inv * g_ref[m] + b_ref[m]            # f32, (rows, 2C)
        acc = acc + jnp.dot(y.astype(jnp.bfloat16), w_ref[m],
                            preferred_element_type=jnp.float32)

    o_ref[...] = acc.reshape(dt, ht, w2, c2).astype(o_ref.dtype)


def _pick_tiles(d2, h2, w2, target_rows=512):
    """Pick (d-tile, h-tile) so rows-per-grid-step ~ target; divisors of d2/h2."""
    plane = h2 * w2
    if plane <= target_rows:
        # Whole (h', w') plane fits: tile over d'.
        ht = h2
        dt = 1
        for t in range(1, d2 + 1):
            if d2 % t == 0 and t * plane <= target_rows:
                dt = t
        return dt, ht
    # Large plane: one d' plane per step, tile over h'.
    dt = 1
    ht = 1
    for t in range(1, h2 + 1):
        if h2 % t == 0 and t * w2 <= target_rows:
            ht = t
    return dt, ht


@jax.jit
def patch_merging_3d(x, gamma, beta, weight):
    """PatchMerging3D forward.

    x:      (B, D, H, W, C)
    gamma:  (8*C,)      LayerNorm weight
    beta:   (8*C,)      LayerNorm bias
    weight: (2*C, 8*C)  nn.Linear weight (PyTorch (out, in) convention, no bias)
    returns (B, ceil(D/2), ceil(H/2), ceil(W/2), 2*C)
    """
    b, d, h, w, c = x.shape
    # Pad spatial dims to even, same as F.pad(x, (0,0, 0,w%2, 0,h%2, 0,d%2)).
    x = jnp.pad(x, ((0, 0), (0, d % 2), (0, h % 2), (0, w % 2), (0, 0)))
    d2, h2, w2 = (d + d % 2) // 2, (h + h % 2) // 2, (w + w % 2) // 2
    c2 = 2 * c

    # Free contiguous reshape: fold (d', d-phase), split h, fold (w-phase, C).
    xv = x.reshape(b * d2 * 2, 2 * h2, w2, c2)

    dt, ht = _pick_tiles(d2, h2, w2)
    grid = (b * d2 // dt, h2 // ht)

    # Parameters pre-chunked & pre-cast once in the wrapper.
    # Chunk m = 2*i + j (d-phase i, h-phase j); its two w-phases are the
    # contiguous in-features [m*2C, (m+1)*2C) — matches torch.cat order.
    gamma4 = gamma.astype(jnp.float32).reshape(4, 1, c2)
    beta4 = beta.astype(jnp.float32).reshape(4, 1, c2)
    w4 = weight.T.reshape(4, c2, c2).astype(jnp.bfloat16)      # (8C,2C)->(4,2C,2C)

    kernel = functools.partial(_merge_kernel, dt=dt, ht=ht, w2=w2, c2=c2)

    out = pl.pallas_call(
        kernel,
        out_shape=jax.ShapeDtypeStruct((b * d2, h2, w2, c2), x.dtype),
        grid=grid,
        in_specs=[
            pl.BlockSpec((2 * dt, 2 * ht, w2, c2), lambda n, m: (n, m, 0, 0)),
            pl.BlockSpec((4, 1, c2), lambda n, m: (0, 0, 0)),
            pl.BlockSpec((4, 1, c2), lambda n, m: (0, 0, 0)),
            pl.BlockSpec((4, c2, c2), lambda n, m: (0, 0, 0)),
        ],
        out_specs=pl.BlockSpec((dt, ht, w2, c2), lambda n, m: (n, m, 0, 0)),
        compiler_params=pltpu.CompilerParams(
            dimension_semantics=("parallel", "parallel"),
        ),
    )(xv, gamma4, beta4, w4)

    return out.reshape(b, d2, h2, w2, c2)


def _reference(x, gamma, beta, weight):
    b, d, h, w, c = x.shape
    x = jnp.pad(x, ((0, 0), (0, d % 2), (0, h % 2), (0, w % 2), (0, 0)))
    parts = [x[:, i::2, j::2, k::2, :]
             for i, j, k in itertools.product(range(2), range(2), range(2))]
    xcat = jnp.concatenate(parts, axis=-1).astype(jnp.float32)
    mu = jnp.mean(xcat, axis=-1, keepdims=True)
    var = jnp.mean((xcat - mu) ** 2, axis=-1, keepdims=True)
    y = (xcat - mu) / jnp.sqrt(var + LN_EPS) * gamma + beta
    return jnp.dot(y, weight.T.astype(jnp.float32))


if __name__ == "__main__":
    key = jax.random.PRNGKey(0)
    k1, k2, k3, k4 = jax.random.split(key, 4)

    # Small shapes; odd D and W exercise the F.pad path.
    B, D, H, W, C = 2, 5, 8, 7, 8
    x = jax.random.normal(k1, (B, D, H, W, C), dtype=jnp.float32)

    # Deterministic synthetic parameters (not a checkpoint load).
    gamma = 1.0 + 0.01 * jax.random.normal(k2, (8 * C,), dtype=jnp.float32)
    beta = 0.01 * jax.random.normal(k3, (8 * C,), dtype=jnp.float32)
    weight = 0.05 * jax.random.normal(k4, (2 * C, 8 * C), dtype=jnp.float32)

    out = jax.block_until_ready(patch_merging_3d(x, gamma, beta, weight))

    ref = _reference(x, gamma, beta, weight)
    assert out.shape == ref.shape == (B, (D + 1) // 2, H // 2, (W + 1) // 2, 2 * C), \
        (out.shape, ref.shape)
    err = float(jnp.max(jnp.abs(out.astype(jnp.float32) - ref)))
    # bf16 MXU projection with f32 accumulation -> relaxed tolerance vs f32 ref.
    assert err < 2e-2, err

    print("KERNEL_OK")
</pallas_src>

<mosaic_0001>
module attributes {stable_mosaic.version = 11 : i64} {
  func.func @_merge_kernel(%arg0: i32, %arg1: i32, %arg2: memref<6x8x4x16xf32, #tpu.memory_space<vmem>>, %arg3: memref<4x1x16xf32, #tpu.memory_space<vmem>>, %arg4: memref<4x1x16xf32, #tpu.memory_space<vmem>>, %arg5: memref<4x16x16xbf16, #tpu.memory_space<vmem>>, %arg6: memref<3x4x4x16xf32, #tpu.memory_space<vmem>>) attributes {dimension_semantics = [#tpu.dimension_semantics<parallel>, #tpu.dimension_semantics<parallel>], iteration_bounds = array<i64: 2, 1>, scalar_prefetch = 0 : i64, scratch_operands = 0 : i64, tpu.core_type = #tpu.core_type<tc>, window_params = [{transform_indices = @transform_0, window_bounds = array<i64: 6, 8, 4, 16>}, {pipeline_mode = #tpu.pipeline_mode<synchronous>, transform_indices = @transform_1, window_bounds = array<i64: 4, 1, 16>}, {pipeline_mode = #tpu.pipeline_mode<synchronous>, transform_indices = @transform_2, window_bounds = array<i64: 4, 1, 16>}, {pipeline_mode = #tpu.pipeline_mode<synchronous>, transform_indices = @transform_3, window_bounds = array<i64: 4, 16, 16>}, {transform_indices = @transform_4, window_bounds = array<i64: 3, 4, 4, 16>}]} {
    %c0 = arith.constant 0 : index
    %c0_0 = arith.constant 0 : index
    %c0_1 = arith.constant 0 : index
    %c0_2 = arith.constant 0 : index
    %0 = vector.load %arg2[%c0, %c0_0, %c0_1, %c0_2] : memref<6x8x4x16xf32, #tpu.memory_space<vmem>>, vector<6x8x4x16xf32>
    %1 = vector.shape_cast %0 : vector<6x8x4x16xf32> to vector<3x2x4x2x4x16xf32>
    %2 = vector.extract_strided_slice %1 {offsets = [0, 0, 0, 0, 0, 0], sizes = [3, 1, 4, 1, 4, 16], strides = [1, 1, 1, 1, 1, 1]} : vector<3x2x4x2x4x16xf32> to vector<3x1x4x1x4x16xf32>
    %3 = vector.shape_cast %2 : vector<3x1x4x1x4x16xf32> to vector<3x4x4x16xf32>
    %4 = vector.shape_cast %3 : vector<3x4x4x16xf32> to vector<48x16xf32>
    %5 = vector.extract_strided_slice %1 {offsets = [0, 0, 0, 1, 0, 0], sizes = [3, 1, 4, 1, 4, 16], strides = [1, 1, 1, 1, 1, 1]} : vector<3x2x4x2x4x16xf32> to vector<3x1x4x1x4x16xf32>
    %6 = vector.shape_cast %5 : vector<3x1x4x1x4x16xf32> to vector<3x4x4x16xf32>
    %7 = vector.shape_cast %6 : vector<3x4x4x16xf32> to vector<48x16xf32>
    %8 = vector.extract_strided_slice %1 {offsets = [0, 1, 0, 0, 0, 0], sizes = [3, 1, 4, 1, 4, 16], strides = [1, 1, 1, 1, 1, 1]} : vector<3x2x4x2x4x16xf32> to vector<3x1x4x1x4x16xf32>
    %9 = vector.shape_cast %8 : vector<3x1x4x1x4x16xf32> to vector<3x4x4x16xf32>
    %10 = vector.shape_cast %9 : vector<3x4x4x16xf32> to vector<48x16xf32>
    %11 = vector.extract_strided_slice %1 {offsets = [0, 1, 0, 1, 0, 0], sizes = [3, 1, 4, 1, 4, 16], strides = [1, 1, 1, 1, 1, 1]} : vector<3x2x4x2x4x16xf32> to vector<3x1x4x1x4x16xf32>
    %12 = vector.shape_cast %11 : vector<3x1x4x1x4x16xf32> to vector<3x4x4x16xf32>
    %13 = vector.shape_cast %12 : vector<3x4x4x16xf32> to vector<48x16xf32>
    %cst = arith.constant 0.000000e+00 : f32
    %14 = vector.broadcast %cst : f32 to vector<48x1xf32>
    %cst_3 = arith.constant dense<0.000000e+00> : vector<48xf32>
    %15 = vector.multi_reduction <add>, %4, %cst_3 [1] : vector<48x16xf32> to vector<48xf32>
    %16 = vector.shape_cast %15 : vector<48xf32> to vector<48x1xf32>
    %17 = arith.addf %14, %16 : vector<48x1xf32>
    %cst_4 = arith.constant dense<0.000000e+00> : vector<48xf32>
    %18 = vector.multi_reduction <add>, %7, %cst_4 [1] : vector<48x16xf32> to vector<48xf32>
    %19 = vector.shape_cast %18 : vector<48xf32> to vector<48x1xf32>
    %20 = arith.addf %17, %19 : vector<48x1xf32>
    %cst_5 = arith.constant dense<0.000000e+00> : vector<48xf32>
    %21 = vector.multi_reduction <add>, %10, %cst_5 [1] : vector<48x16xf32> to vector<48xf32>
    %22 = vector.shape_cast %21 : vector<48xf32> to vector<48x1xf32>
    %23 = arith.addf %20, %22 : vector<48x1xf32>
    %cst_6 = arith.constant dense<0.000000e+00> : vector<48xf32>
    %24 = vector.multi_reduction <add>, %13, %cst_6 [1] : vector<48x16xf32> to vector<48xf32>
    %25 = vector.shape_cast %24 : vector<48xf32> to vector<48x1xf32>
    %26 = arith.addf %23, %25 : vector<48x1xf32>
    %cst_7 = arith.constant 1.562500e-02 : f32
    %27 = vector.broadcast %cst_7 : f32 to vector<48x1xf32>
    %28 = arith.mulf %26, %27 : vector<48x1xf32>
    %cst_8 = arith.constant 0.000000e+00 : f32
    %29 = vector.broadcast %cst_8 : f32 to vector<48x1xf32>
    %30 = vector.broadcast %28 : vector<48x1xf32> to vector<48x16xf32>
    %31 = arith.subf %4, %30 : vector<48x16xf32>
    %32 = arith.mulf %31, %31 : vector<48x16xf32>
    %cst_9 = arith.constant dense<0.000000e+00> : vector<48xf32>
    %33 = vector.multi_reduction <add>, %32, %cst_9 [1] : vector<48x16xf32> to vector<48xf32>
    %34 = vector.shape_cast %33 : vector<48xf32> to vector<48x1xf32>
    %35 = arith.addf %29, %34 : vector<48x1xf32>
    %36 = vector.broadcast %28 : vector<48x1xf32> to vector<48x16xf32>
    %37 = arith.subf %7, %36 : vector<48x16xf32>
    %38 = arith.mulf %37, %37 : vector<48x16xf32>
    %cst_10 = arith.constant dense<0.000000e+00> : vector<48xf32>
    %39 = vector.multi_reduction <add>, %38, %cst_10 [1] : vector<48x16xf32> to vector<48xf32>
    %40 = vector.shape_cast %39 : vector<48xf32> to vector<48x1xf32>
    %41 = arith.addf %35, %40 : vector<48x1xf32>
    %42 = vector.broadcast %28 : vector<48x1xf32> to vector<48x16xf32>
    %43 = arith.subf %10, %42 : vector<48x16xf32>
    %44 = arith.mulf %43, %43 : vector<48x16xf32>
    %cst_11 = arith.constant dense<0.000000e+00> : vector<48xf32>
    %45 = vector.multi_reduction <add>, %44, %cst_11 [1] : vector<48x16xf32> to vector<48xf32>
    %46 = vector.shape_cast %45 : vector<48xf32> to vector<48x1xf32>
    %47 = arith.addf %41, %46 : vector<48x1xf32>
    %48 = vector.broadcast %28 : vector<48x1xf32> to vector<48x16xf32>
    %49 = arith.subf %13, %48 : vector<48x16xf32>
    %50 = arith.mulf %49, %49 : vector<48x16xf32>
    %cst_12 = arith.constant dense<0.000000e+00> : vector<48xf32>
    %51 = vector.multi_reduction <add>, %50, %cst_12 [1] : vector<48x16xf32> to vector<48xf32>
    %52 = vector.shape_cast %51 : vector<48xf32> to vector<48x1xf32>
    %53 = arith.addf %47, %52 : vector<48x1xf32>
    %cst_13 = arith.constant 1.562500e-02 : f32
    %54 = vector.broadcast %cst_13 : f32 to vector<48x1xf32>
    %55 = arith.mulf %53, %54 : vector<48x1xf32>
    %cst_14 = arith.constant 9.99999974E-6 : f32
    %56 = vector.broadcast %cst_14 : f32 to vector<48x1xf32>
    %57 = arith.addf %55, %56 : vector<48x1xf32>
    %58 = math.rsqrt %57 : vector<48x1xf32>
    %cst_15 = arith.constant 0.000000e+00 : f32
    %59 = vector.broadcast %cst_15 : f32 to vector<48x16xf32>
    %60 = vector.broadcast %58 : vector<48x1xf32> to vector<48x16xf32>
    %61 = arith.mulf %31, %60 : vector<48x16xf32>
    %c0_16 = arith.constant 0 : index
    %c0_17 = arith.constant 0 : index
    %c0_18 = arith.constant 0 : index
    %62 = vector.load %arg3[%c0_16, %c0_17, %c0_18] : memref<4x1x16xf32, #tpu.memory_space<vmem>>, vector<1x1x16xf32>
    %63 = vector.shape_cast %62 : vector<1x1x16xf32> to vector<1x16xf32>
    %64 = vector.broadcast %63 : vector<1x16xf32> to vector<48x16xf32>
    %65 = arith.mulf %61, %64 : vector<48x16xf32>
    %c0_19 = arith.constant 0 : index
    %c0_20 = arith.constant 0 : index
    %c0_21 = arith.constant 0 : index
    %66 = vector.load %arg4[%c0_19, %c0_20, %c0_21] : memref<4x1x16xf32, #tpu.memory_space<vmem>>, vector<1x1x16xf32>
    %67 = vector.shape_cast %66 : vector<1x1x16xf32> to vector<1x16xf32>
    %68 = vector.broadcast %67 : vector<1x16xf32> to vector<48x16xf32>
    %69 = arith.addf %65, %68 : vector<48x16xf32>
    %70 = arith.truncf %69 : vector<48x16xf32> to vector<48x16xbf16>
    %c0_22 = arith.constant 0 : index
    %c0_23 = arith.constant 0 : index
    %c0_24 = arith.constant 0 : index
    %71 = vector.load %arg5[%c0_22, %c0_23, %c0_24] : memref<4x16x16xbf16, #tpu.memory_space<vmem>>, vector<1x16x16xbf16>
    %72 = vector.shape_cast %71 : vector<1x16x16xbf16> to vector<16x16xbf16>
    %cst_25 = arith.constant dense<0.000000e+00> : vector<48x16xf32>
    %73 = tpu.matmul %70, %72, %cst_25 {dimension_numbers = #tpu.dot_dimension_numbers<[1], [0], [0], [1], [0, 0, 1, 1], [], []>} : vector<48x16xbf16>, vector<16x16xbf16>, vector<48x16xf32> -> vector<48x16xf32>
    %74 = arith.addf %59, %73 : vector<48x16xf32>
    %75 = vector.broadcast %58 : vector<48x1xf32> to vector<48x16xf32>
    %76 = arith.mulf %37, %75 : vector<48x16xf32>
    %c1 = arith.constant 1 : index
    %c0_26 = arith.constant 0 : index
    %c0_27 = arith.constant 0 : index
    %77 = vector.load %arg3[%c1, %c0_26, %c0_27] : memref<4x1x16xf32, #tpu.memory_space<vmem>>, vector<1x1x16xf32>
    %78 = vector.shape_cast %77 : vector<1x1x16xf32> to vector<1x16xf32>
    %79 = vector.broadcast %78 : vector<1x16xf32> to vector<48x16xf32>
    %80 = arith.mulf %76, %79 : vector<48x16xf32>
    %c1_28 = arith.constant 1 : index
    %c0_29 = arith.constant 0 : index
    %c0_30 = arith.constant 0 : index
    %81 = vector.load %arg4[%c1_28, %c0_29, %c0_30] : memref<4x1x16xf32, #tpu.memory_space<vmem>>, vector<1x1x16xf32>
    %82 = vector.shape_cast %81 : vector<1x1x16xf32> to vector<1x16xf32>
    %83 = vector.broadcast %82 : vector<1x16xf32> to vector<48x16xf32>
    %84 = arith.addf %80, %83 : vector<48x16xf32>
    %85 = arith.truncf %84 : vector<48x16xf32> to vector<48x16xbf16>
    %c1_31 = arith.constant 1 : index
    %c0_32 = arith.constant 0 : index
    %c0_33 = arith.constant 0 : index
    %86 = vector.load %arg5[%c1_31, %c0_32, %c0_33] : memref<4x16x16xbf16, #tpu.memory_space<vmem>>, vector<1x16x16xbf16>
    %87 = vector.shape_cast %86 : vector<1x16x16xbf16> to vector<16x16xbf16>
    %cst_34 = arith.constant dense<0.000000e+00> : vector<48x16xf32>
    %88 = tpu.matmul %85, %87, %cst_34 {dimension_numbers = #tpu.dot_dimension_numbers<[1], [0], [0], [1], [0, 0, 1, 1], [], []>} : vector<48x16xbf16>, vector<16x16xbf16>, vector<48x16xf32> -> vector<48x16xf32>
    %89 = arith.addf %74, %88 : vector<48x16xf32>
    %90 = vector.broadcast %58 : vector<48x1xf32> to vector<48x16xf32>
    %91 = arith.mulf %43, %90 : vector<48x16xf32>
    %c2 = arith.constant 2 : index
    %c0_35 = arith.constant 0 : index
    %c0_36 = arith.constant 0 : index
    %92 = vector.load %arg3[%c2, %c0_35, %c0_36] : memref<4x1x16xf32, #tpu.memory_space<vmem>>, vector<1x1x16xf32>
    %93 = vector.shape_cast %92 : vector<1x1x16xf32> to vector<1x16xf32>
    %94 = vector.broadcast %93 : vector<1x16xf32> to vector<48x16xf32>
    %95 = arith.mulf %91, %94 : vector<48x16xf32>
    %c2_37 = arith.constant 2 : index
    %c0_38 = arith.constant 0 : index
    %c0_39 = arith.constant 0 : index
    %96 = vector.load %arg4[%c2_37, %c0_38, %c0_39] : memref<4x1x16xf32, #tpu.memory_space<vmem>>, vector<1x1x16xf32>
    %97 = vector.shape_cast %96 : vector<1x1x16xf32> to vector<1x16xf32>
    %98 = vector.broadcast %97 : vector<1x16xf32> to vector<48x16xf32>
    %99 = arith.addf %95, %98 : vector<48x16xf32>
    %100 = arith.truncf %99 : vector<48x16xf32> to vector<48x16xbf16>
    %c2_40 = arith.constant 2 : index
    %c0_41 = arith.constant 0 : index
    %c0_42 = arith.constant 0 : index
    %101 = vector.load %arg5[%c2_40, %c0_41, %c0_42] : memref<4x16x16xbf16, #tpu.memory_space<vmem>>, vector<1x16x16xbf16>
    %102 = vector.shape_cast %101 : vector<1x16x16xbf16> to vector<16x16xbf16>
    %cst_43 = arith.constant dense<0.000000e+00> : vector<48x16xf32>
    %103 = tpu.matmul %100, %102, %cst_43 {dimension_numbers = #tpu.dot_dimension_numbers<[1], [0], [0], [1], [0, 0, 1, 1], [], []>} : vector<48x16xbf16>, vector<16x16xbf16>, vector<48x16xf32> -> vector<48x16xf32>
    %104 = arith.addf %89, %103 : vector<48x16xf32>
    %105 = vector.broadcast %58 : vector<48x1xf32> to vector<48x16xf32>
    %106 = arith.mulf %49, %105 : vector<48x16xf32>
    %c3 = arith.constant 3 : index
    %c0_44 = arith.constant 0 : index
    %c0_45 = arith.constant 0 : index
    %107 = vector.load %arg3[%c3, %c0_44, %c0_45] : memref<4x1x16xf32, #tpu.memory_space<vmem>>, vector<1x1x16xf32>
    %108 = vector.shape_cast %107 : vector<1x1x16xf32> to vector<1x16xf32>
    %109 = vector.broadcast %108 : vector<1x16xf32> to vector<48x16xf32>
    %110 = arith.mulf %106, %109 : vector<48x16xf32>
    %c3_46 = arith.constant 3 : index
    %c0_47 = arith.constant 0 : index
    %c0_48 = arith.constant 0 : index
    %111 = vector.load %arg4[%c3_46, %c0_47, %c0_48] : memref<4x1x16xf32, #tpu.memory_space<vmem>>, vector<1x1x16xf32>
    %112 = vector.shape_cast %111 : vector<1x1x16xf32> to vector<1x16xf32>
    %113 = vector.broadcast %112 : vector<1x16xf32> to vector<48x16xf32>
    %114 = arith.addf %110, %113 : vector<48x16xf32>
    %115 = arith.truncf %114 : vector<48x16xf32> to vector<48x16xbf16>
    %c3_49 = arith.constant 3 : index
    %c0_50 = arith.constant 0 : index
    %c0_51 = arith.constant 0 : index
    %116 = vector.load %arg5[%c3_49, %c0_50, %c0_51] : memref<4x16x16xbf16, #tpu.memory_space<vmem>>, vector<1x16x16xbf16>
    %117 = vector.shape_cast %116 : vector<1x16x16xbf16> to vector<16x16xbf16>
    %cst_52 = arith.constant dense<0.000000e+00> : vector<48x16xf32>
    %118 = tpu.matmul %115, %117, %cst_52 {dimension_numbers = #tpu.dot_dimension_numbers<[1], [0], [0], [1], [0, 0, 1, 1], [], []>} : vector<48x16xbf16>, vector<16x16xbf16>, vector<48x16xf32> -> vector<48x16xf32>
    %119 = arith.addf %104, %118 : vector<48x16xf32>
    %120 = vector.shape_cast %119 : vector<48x16xf32> to vector<3x4x4x16xf32>
    %c0_53 = arith.constant 0 : index
    %c0_54 = arith.constant 0 : index
    %c0_55 = arith.constant 0 : index
    %c0_56 = arith.constant 0 : index
    %121 = vector.load %arg6[%c0_53, %c0_54, %c0_55, %c0_56] : memref<3x4x4x16xf32, #tpu.memory_space<vmem>>, vector<3x4x4x16xf32>
    tpu.vector_store %arg6[%c0_53, %c0_54, %c0_55, %c0_56], %120 {strides = array<i32>} : memref<3x4x4x16xf32, #tpu.memory_space<vmem>>, vector<3x4x4x16xf32>,
    return
  }
  func.func @transform_0(%arg0: i32, %arg1: i32) -> (i32, i32, i32, i32) {
    %c0_i32 = arith.constant 0 : i32
    %c0_i32_0 = arith.constant 0 : i32
    %c0_i32_1 = arith.constant 0 : i32
    return %arg0, %arg1, %c0_i32, %c0_i32_0 : i32, i32, i32, i32
  }
  func.func @transform_1(%arg0: i32, %arg1: i32) -> (i32, i32, i32) {
    %c0_i32 = arith.constant 0 : i32
    %c0_i32_0 = arith.constant 0 : i32
    %c0_i32_1 = arith.constant 0 : i32
    %c0_i32_2 = arith.constant 0 : i32
    return %c0_i32, %c0_i32_0, %c0_i32_1 : i32, i32, i32
  }
  func.func @transform_2(%arg0: i32, %arg1: i32) -> (i32, i32, i32) {
    %c0_i32 = arith.constant 0 : i32
    %c0_i32_0 = arith.constant 0 : i32
    %c0_i32_1 = arith.constant 0 : i32
    %c0_i32_2 = arith.constant 0 : i32
    return %c0_i32, %c0_i32_0, %c0_i32_1 : i32, i32, i32
  }
  func.func @transform_3(%arg0: i32, %arg1: i32) -> (i32, i32, i32) {
    %c0_i32 = arith.constant 0 : i32
    %c0_i32_0 = arith.constant 0 : i32
    %c0_i32_1 = arith.constant 0 : i32
    %c0_i32_2 = arith.constant 0 : i32
    return %c0_i32, %c0_i32_0, %c0_i32_1 : i32, i32, i32
  }
  func.func @transform_4(%arg0: i32, %arg1: i32) -> (i32, i32, i32, i32) {
    %c0_i32 = arith.constant 0 : i32
    %c0_i32_0 = arith.constant 0 : i32
    %c0_i32_1 = arith.constant 0 : i32
    return %arg0, %arg1, %c0_i32, %c0_i32_0 : i32, i32, i32, i32
  }
}

</mosaic_0001>

<llo_original>
// kernel: patch_merging_3d.1
$region0: #{patch_merging_3d.1}
  #allocation0 [shape = 'u32[]', space=smem, size = 0x4, offset = 0x4, fixed_abs, tag = 'smem constant byte address 0x4 - core index']
  #allocation1 [shape = 'u32[144,128]{1,0:T(1,128)}', space=vmem, size = 0x12000, scoped, tag = 'internal scratch']
  %s0 = inlined_call_operand.vmem [shape: f32[12,8,4,16], index: 0, kind: input, shape index: {}]
  %s1 = inlined_call_operand.vmem [shape: f32[4,1,16], index: 1, kind: input, shape index: {}]
  %s2 = inlined_call_operand.vmem [shape: f32[4,1,16], index: 2, kind: input, shape index: {}]
  %s3 = inlined_call_operand.vmem [shape: bf16[4,16,16], index: 3, kind: input, shape index: {}]
  %s4 = inlined_call_operand.hbm [shape: f32[6,4,4,16], index: 4, kind: output, shape index: {}]
  %s5 = sld [smem:[#allocation0]]
  $region49: #{patch_merging_3d.1} parent=0
    _
  %s7 = ssub.s32 1, %s5
  %s8 = scalar_select 0, %s7, %s5
  $region1: #{patch_merging_3d.1} parent=0
    #allocation2 [shape = 'u8[49152]{0}', space=vmem, size = 0xc000, scoped, tag = 'output window, operand 0']
    #allocation3 [shape = 's32[2]{0}', space=sflag, size = 0x8, scoped, tag = 'scoped memory for patch_merging_3d.1']
    %9 = vsyncpa [#allocation3], 0
    %s10 = scalar_lea.sflag [#allocation3], 1
    %11 = vsyncpa %s10, 0
    loop: start=0, step=1, limit=4
    $region2: #{patch_merging_3d.1} parent=1 // loop_pre_header
      _
    $region3: #{patch_merging_3d.1} parent=1 // loop_header
      %s13 = sphi 0, %s17
      %p14 = scmp.ge.s32.totalorder %s13, 4
      %s20 = sphi 0, %s32
      %s21 = sphi 0, %s28
      %s22 = sphi 0, %s20
      %s23 = sphi 0, %s21
      %s24 = sphi 0, %s22
      %s25 = sphi 0, %s23
      %s37 = sphi 0, %s39
      %s40 = sphi 0, %s37
      %s41 = sphi 0, %s40
      %s57 = sphi 0, %s41
      %s61 = sphi 0, %s61
      %s63 = sphi 0, %s61
      %s64 = sphi 0, %s63
      %s78 = sphi 0, %s64
      %s82 = sphi 0, %s82
      %s84 = sphi 0, %s82
      %s85 = sphi 0, %s84
      %s99 = sphi 0, %s85
      %s103 = sphi 0, %s103
      %s105 = sphi 0, %s103
      %s106 = sphi 0, %s105
      %s120 = sphi 0, %s106
      %s128 = sphi 0, %s130
      %s131 = sphi 0, %s128
      %s132 = sphi 0, %s131
      %s148 = sphi 0, %s132
    $region4: #{patch_merging_3d.1} parent=1 // loop_header_branch
      %16 = sbr.rel (%p14) target = $region8
    $region5: #{patch_merging_3d.1} parent=1 // loop_body
      %s18 = ssub.s32 %s13, 1
      %s19 = ssub.s32 %s13, 2
      %s26 = sadd.s32 1, %s21
      %p27 = scmp.ge.s32.totalorder %s26, 1
      %s28 = scalar_select %p27, 0, %s26
      %s29 = sadd.s32 1, %s20
      %s30 = scalar_select %p27, %s29, %s20
      %p31 = scmp.ge.s32.totalorder %s30, 2
      %s32 = scalar_select %p31, 0, %s30
      %s33 = ssub.s32 %s20, %s32
      %s34 = ssub.s32 %s21, %s28
      %s35 = sor.u32 %s33, %s34
      %p36 = scmp.eq.s32.totalorder %s35, 0
      %s38 = sadd.s32 %s37, 1
      %s39 = scalar_select %p36, %s37, %s38
      %p42 = pneg %p36
      %p43 = scmp.eq.s32.totalorder %s13, 1
      %p44 = por %p42, %p43
      %p45 = scmp.ne.s32.totalorder %s37, %s40
      %p46 = scmp.eq.s32.totalorder %s13, 0
      %p47 = por %p45, %p46
      %p48 = scmp.ne.s32.totalorder %s37, %s40
      %p49 = scmp.eq.s32.totalorder %s18, 1
      %p50 = por %p48, %p49
      %p51 = scmp.ne.s32.totalorder %s40, %s41
      %p52 = scmp.eq.s32.totalorder %s18, 0
      %p53 = por %p51, %p52
      %p54 = scmp.ne.s32.totalorder %s40, %s41
      %p55 = scmp.eq.s32.totalorder %s19, 1
      %p56 = por %p54, %p55
      %p58 = scmp.ne.s32.totalorder %s41, %s57
      %p59 = scmp.eq.s32.totalorder %s19, 0
      %p60 = por %p58, %p59
      %s62 = sadd.s32 %s61, 1
      %p65 = scmp.eq.s32.totalorder %s13, 1
      %p66 = scmp.ne.s32.totalorder %s61, %s63
      %p67 = scmp.eq.s32.totalorder %s13, 0
      %p68 = por %p66, %p67
      %p69 = scmp.ne.s32.totalorder %s61, %s63
      %p70 = scmp.eq.s32.totalorder %s18, 1
      %p71 = por %p69, %p70
      %p72 = scmp.ne.s32.totalorder %s63, %s64
      %p73 = scmp.eq.s32.totalorder %s18, 0
      %p74 = por %p72, %p73
      %p75 = scmp.ne.s32.totalorder %s63, %s64
      %p76 = scmp.eq.s32.totalorder %s19, 1
      %p77 = por %p75, %p76
      %p79 = scmp.ne.s32.totalorder %s64, %s78
      %p80 = scmp.eq.s32.totalorder %s19, 0
      %p81 = por %p79, %p80
      %s83 = sadd.s32 %s82, 1
      %p86 = scmp.eq.s32.totalorder %s13, 1
      %p87 = scmp.ne.s32.totalorder %s82, %s84
      %p88 = scmp.eq.s32.totalorder %s13, 0
      %p89 = por %p87, %p88
      %p90 = scmp.ne.s32.totalorder %s82, %s84
      %p91 = scmp.eq.s32.totalorder %s18, 1
      %p92 = por %p90, %p91
      %p93 = scmp.ne.s32.totalorder %s84, %s85
      %p94 = scmp.eq.s32.totalorder %s18, 0
      %p95 = por %p93, %p94
      %p96 = scmp.ne.s32.totalorder %s84, %s85
      %p97 = scmp.eq.s32.totalorder %s19, 1
      %p98 = por %p96, %p97
      %p100 = scmp.ne.s32.totalorder %s85, %s99
      %p101 = scmp.eq.s32.totalorder %s19, 0
      %p102 = por %p100, %p101
      %s104 = sadd.s32 %s103, 1
      %p107 = scmp.eq.s32.totalorder %s13, 1
      %p108 = scmp.ne.s32.totalorder %s103, %s105
      %p109 = scmp.eq.s32.totalorder %s13, 0
      %p110 = por %p108, %p109
      %p111 = scmp.ne.s32.totalorder %s103, %s105
      %p112 = scmp.eq.s32.totalorder %s18, 1
      %p113 = por %p111, %p112
      %p114 = scmp.ne.s32.totalorder %s105, %s106
      %p115 = scmp.eq.s32.totalorder %s18, 0
      %p116 = por %p114, %p115
      %p117 = scmp.ne.s32.totalorder %s105, %s106
      %p118 = scmp.eq.s32.totalorder %s19, 1
      %p119 = por %p117, %p118
      %p121 = scmp.ne.s32.totalorder %s106, %s120
      %p122 = scmp.eq.s32.totalorder %s19, 0
      %p123 = por %p121, %p122
      %s124 = ssub.s32 %s20, %s32
      %s125 = ssub.s32 %s21, %s28
      %s126 = sor.u32 %s124, %s125
      %p127 = scmp.eq.s32.totalorder %s126, 0
      %s129 = sadd.s32 %s128, 1
      %s130 = scalar_select %p127, %s128, %s129
      %p133 = pneg %p127
      %p134 = scmp.eq.s32.totalorder %s13, 1
      %p135 = por %p133, %p134
      %p136 = scmp.ne.s32.totalorder %s128, %s131
      %p137 = scmp.eq.s32.totalorder %s13, 0
      %p138 = por %p136, %p137
      %p139 = scmp.ne.s32.totalorder %s128, %s131
      %p140 = scmp.eq.s32.totalorder %s18, 1
      %p141 = por %p139, %p140
      %p142 = scmp.ne.s32.totalorder %s131, %s132
      %p143 = scmp.eq.s32.totalorder %s18, 0
      %p144 = por %p142, %p143
      %p145 = scmp.ne.s32.totalorder %s131, %s132
      %p146 = scmp.eq.s32.totalorder %s19, 1
      %p147 = por %p145, %p146
      %p149 = scmp.ne.s32.totalorder %s132, %s148
      %p150 = scmp.eq.s32.totalorder %s19, 0
      %p151 = por %p149, %p150
      %p152 = scmp.le.s32.totalorder 1, %s13
      %p153 = scmp.lt.s32.totalorder %s13, 3
      %p154 = pnand %p152, %p153
      %p155 = pneg %p154
      // Predicated region
      $region9: #{patch_merging_3d.1} parent=5 // pred_check
        _
      $region10: #{patch_merging_3d.1} parent=5 // pred_check_branch
        %157 = sbr.rel (%p154) target = $region12
      $region11: #{patch_merging_3d.1} parent=5 // pred_region
        %s158 = ssub.s32 %s13, 1
        // Predicated region
        $region13: #{patch_merging_3d.1} parent=11 // pred_check
          %p159 = pneg %p74
        $region14: #{patch_merging_3d.1} parent=11 // pred_check_branch
          %161 = sbr.rel (%p159) target = $region16
        $region15: #{patch_merging_3d.1} parent=11 // pred_region
          _
        $region16: #{patch_merging_3d.1} parent=11 // pred_fallthru
          _
        // Predicated region
        $region17: #{patch_merging_3d.1} parent=11 // pred_check
          %p162 = pneg %p95
        $region18: #{patch_merging_3d.1} parent=11 // pred_check_branch
          %164 = sbr.rel (%p162) target = $region20
        $region19: #{patch_merging_3d.1} parent=11 // pred_region
          _
        $region20: #{patch_merging_3d.1} parent=11 // pred_fallthru
          _
        // Predicated region
        $region21: #{patch_merging_3d.1} parent=11 // pred_check
          %p165 = pneg %p116
        $region22: #{patch_merging_3d.1} parent=11 // pred_check_branch
          %167 = sbr.rel (%p165) target = $region24
        $region23: #{patch_merging_3d.1} parent=11 // pred_region
          _
        $region24: #{patch_merging_3d.1} parent=11 // pred_fallthru
          _
      $region12: #{patch_merging_3d.1} parent=5 // pred_fallthru
        _
      %p168 = scmp.lt.s32.totalorder %s13, 2
      // Predicated region
      $region25: #{patch_merging_3d.1} parent=5 // pred_check
        %p169 = pneg %p168
      $region26: #{patch_merging_3d.1} parent=5 // pred_check_branch
        %171 = sbr.rel (%p169) target = $region28
      $region27: #{patch_merging_3d.1} parent=5 // pred_region
        // Predicated region
        $region29: #{patch_merging_3d.1} parent=27 // pred_check
          %p172 = pneg %p47
        $region30: #{patch_merging_3d.1} parent=27 // pred_check_branch
          %174 = sbr.rel (%p172) target = $region32
        $region31: #{patch_merging_3d.1} parent=27 // pred_region
          %s175 = smul.u32 6, %s20
          %s176 = smul.u32 8, %s21
          %p177 = scmp.lt.s32.totalorder %s175, 11
          %s178 = scalar_select %p177, %s175, 11
          %p179 = scmp.lt.s32.totalorder %s176, 7
          %s180 = scalar_select %p179, %s176, 7
          %s181 = smul.addr %s178, 8
          %s182 = sadd.s32 %s180, %s181
          %s183 = smul.addr %s182, 4
          %s184 = scalar_lea.vmem %s0, %s183
          %s185 = smul.u32 6, %s20
          %s186 = smul.u32 8, %s21
        $region32: #{patch_merging_3d.1} parent=27 // pred_fallthru
          _
      $region28: #{patch_merging_3d.1} parent=5 // pred_fallthru
        _
      %p187 = scmp.le.s32.totalorder 1, %s13
      %p188 = scmp.lt.s32.totalorder %s13, 3
      %p189 = pnand %p187, %p188
      %p190 = pneg %p189
      // Predicated region
      $region33: #{patch_merging_3d.1} parent=5 // pred_check
        _
      $region34: #{patch_merging_3d.1} parent=5 // pred_check_branch
        %192 = sbr.rel (%p189) target = $region36
      $region35: #{patch_merging_3d.1} parent=5 // pred_region
        %s193 = ssub.s32 %s13, 1
        %s194 = smul.u32 6, %s22
        %s195 = smul.u32 8, %s23
        %p196 = scmp.lt.s32.totalorder %s194, 11
        %s197 = scalar_select %p196, %s194, 11
        %p198 = scmp.lt.s32.totalorder %s195, 7
        %s199 = scalar_select %p198, %s195, 7
        %s200 = smul.addr %s197, 8
        %s201 = sadd.s32 %s199, %s200
        %s202 = smul.addr %s201, 4
        %s203 = scalar_lea.vmem %s0, %s202
        %p204 = pneg %p53
        %p205 = pneg %p50
        %p206 = pneg %p74
        %p207 = pneg %p71
        %p208 = pneg %p95
        %p209 = pneg %p92
        %p210 = pneg %p116
        %p211 = pneg %p113
        %p212 = pneg %p144
        %p213 = pneg %p141
        %s214 = sand.u32 %s131, 1
        %s215 = scalar_lea.sflag [#allocation3], %s214
        %s216 = sand.u32 %s131, 1
        %s217 = smul.addr %s216, 48
        %s218 = scalar_lea.vmem [#allocation2], %s217
        %s219 = smul.u32 6, %s22
        %s220 = smul.u32 8, %s23
        %p221 = scmp.lt.s32.totalorder %s219, 11
        %s222 = scalar_select %p221, %s219, 11
        %p223 = scmp.lt.s32.totalorder %s220, 7
        %s224 = scalar_select %p223, %s220, 7
        %s225 = smul.addr %s222, 8
        %s226 = sadd.s32 %s224, %s225
        %s227 = smul.addr %s226, 4
        %s228 = scalar_lea.vmem %s0, %s227
        %s229 = smul.u32 6, %s22
        %s230 = smul.u32 8, %s23
        %s231 = smul.u32 3, %s22
        %s232 = smul.u32 4, %s23
        %v234 = vld [vmem:[%s228] sm:$0xf]
        %v235 = vld [vmem:[%s228 + $0x4] sm:$0xf]
        %v236 = vld [vmem:[%s228 + $0x8] sm:$0xf]
        %v237 = vld [vmem:[%s228 + $0xc] sm:$0xf]
        %v238 = vld [vmem:[%s228 + $0x10] sm:$0xf]
        %v239 = vld [vmem:[%s228 + $0x14] sm:$0xf]
        %v240 = vld [vmem:[%s228 + $0x18] sm:$0xf]
        %v241 = vld [vmem:[%s228 + $0x1c] sm:$0xf]
        %v242 = vld [vmem:[%s228 + $0x20] sm:$0xf]
        %v243 = vld [vmem:[%s228 + $0x24] sm:$0xf]
        %v244 = vld [vmem:[%s228 + $0x28] sm:$0xf]
        %v245 = vld [vmem:[%s228 + $0x2c] sm:$0xf]
        %v246 = vld [vmem:[%s228 + $0x30] sm:$0xf]
        %v247 = vld [vmem:[%s228 + $0x34] sm:$0xf]
        %v248 = vld [vmem:[%s228 + $0x38] sm:$0xf]
        %v249 = vld [vmem:[%s228 + $0x3c] sm:$0xf]
        %v250 = vld [vmem:[%s228 + $0x40] sm:$0xf]
        %v251 = vld [vmem:[%s228 + $0x44] sm:$0xf]
        %v252 = vld [vmem:[%s228 + $0x48] sm:$0xf]
        %v253 = vld [vmem:[%s228 + $0x4c] sm:$0xf]
        %v254 = vld [vmem:[%s228 + $0x50] sm:$0xf]
        %v255 = vld [vmem:[%s228 + $0x54] sm:$0xf]
        %v256 = vld [vmem:[%s228 + $0x58] sm:$0xf]
        %v257 = vld [vmem:[%s228 + $0x5c] sm:$0xf]
        %v258 = vld [vmem:[%s228 + $0x60] sm:$0xf]
        %v259 = vld [vmem:[%s228 + $0x64] sm:$0xf]
        %v260 = vld [vmem:[%s228 + $0x68] sm:$0xf]
        %v261 = vld [vmem:[%s228 + $0x6c] sm:$0xf]
        %v262 = vld [vmem:[%s228 + $0x70] sm:$0xf]
        %v263 = vld [vmem:[%s228 + $0x74] sm:$0xf]
        %v264 = vld [vmem:[%s228 + $0x78] sm:$0xf]
        %v265 = vld [vmem:[%s228 + $0x7c] sm:$0xf]
        %v266 = vld [vmem:[%s228 + $0x80] sm:$0xf]
        %v267 = vld [vmem:[%s228 + $0x84] sm:$0xf]
        %v268 = vld [vmem:[%s228 + $0x88] sm:$0xf]
        %v269 = vld [vmem:[%s228 + $0x8c] sm:$0xf]
        %v270 = vld [vmem:[%s228 + $0x90] sm:$0xf]
        %v271 = vld [vmem:[%s228 + $0x94] sm:$0xf]
        %v272 = vld [vmem:[%s228 + $0x98] sm:$0xf]
        %v273 = vld [vmem:[%s228 + $0x9c] sm:$0xf]
        %v274 = vld [vmem:[%s228 + $0xa0] sm:$0xf]
        %v275 = vld [vmem:[%s228 + $0xa4] sm:$0xf]
        %v276 = vld [vmem:[%s228 + $0xa8] sm:$0xf]
        %v277 = vld [vmem:[%s228 + $0xac] sm:$0xf]
        %v278 = vld [vmem:[%s228 + $0xb0] sm:$0xf]
        %v279 = vld [vmem:[%s228 + $0xb4] sm:$0xf]
        %v280 = vld [vmem:[%s228 + $0xb8] sm:$0xf]
        %v281 = vld [vmem:[%s228 + $0xbc] sm:$0xf]
        %v294 = vcombine.low %v234, %v236
        %v295 = vcombine.low %v238, %v240
        %v296 = vcombine.low %v250, %v252
        %v297 = vcombine.low %v254, %v256
        %v298 = vcombine.low %v266, %v268
        %v299 = vcombine.low %v270, %v272
        %vm306 = vcmask 130048
        %v307 = vsel %vm306, %v294, 0.0
        %308 = vadd.xlane.f32.xlu0 %v307
        %v309 = vpop.xlane.xlu0 %308
        %v310 = vsel %vm306, %v295, 0.0
        %311 = vadd.xlane.f32.xlu0 %v310
        %v312 = vpop.xlane.xlu0 %311
        %v313 = vsel %vm306, %v296, 0.0
        %314 = vadd.xlane.f32.xlu0 %v313
        %v315 = vpop.xlane.xlu0 %314
        %v316 = vsel %vm306, %v297, 0.0
        %317 = vadd.xlane.f32.xlu0 %v316
        %v318 = vpop.xlane.xlu0 %317
        %v319 = vsel %vm306, %v298, 0.0
        %320 = vadd.xlane.f32.xlu0 %v319
        %v321 = vpop.xlane.xlu0 %320
        %v322 = vsel %vm306, %v299, 0.0
        %323 = vadd.xlane.f32.xlu0 %v322
        %v324 = vpop.xlane.xlu0 %323
        %v325 = vadd.f32 %v309, 0.0
        %v326 = vadd.f32 %v312, 0.0
        %v327 = vadd.f32 %v315, 0.0
        %v328 = vadd.f32 %v318, 0.0
        %v329 = vadd.f32 %v321, 0.0
        %v330 = vadd.f32 %v324, 0.0
        %v343 = vcombine.low %v235, %v237
        %v344 = vcombine.low %v239, %v241
        %v345 = vcombine.low %v251, %v253
        %v346 = vcombine.low %v255, %v257
        %v347 = vcombine.low %v267, %v269
        %v348 = vcombine.low %v271, %v273
        %v355 = vsel %vm306, %v343, 0.0
        %356 = vadd.xlane.f32.xlu0 %v355
        %v357 = vpop.xlane.xlu0 %356
        %v358 = vsel %vm306, %v344, 0.0
        %359 = vadd.xlane.f32.xlu0 %v358
        %v360 = vpop.xlane.xlu0 %359
        %v361 = vsel %vm306, %v345, 0.0
        %362 = vadd.xlane.f32.xlu0 %v361
        %v363 = vpop.xlane.xlu0 %362
        %v364 = vsel %vm306, %v346, 0.0
        %365 = vadd.xlane.f32.xlu0 %v364
        %v366 = vpop.xlane.xlu0 %365
        %v367 = vsel %vm306, %v347, 0.0
        %368 = vadd.xlane.f32.xlu0 %v367
        %v369 = vpop.xlane.xlu0 %368
        %v370 = vsel %vm306, %v348, 0.0
        %371 = vadd.xlane.f32.xlu0 %v370
        %v372 = vpop.xlane.xlu0 %371
        %v373 = vadd.f32 %v325, %v357
        %v374 = vadd.f32 %v326, %v360
        %v375 = vadd.f32 %v327, %v363
        %v376 = vadd.f32 %v328, %v366
        %v377 = vadd.f32 %v329, %v369
        %v378 = vadd.f32 %v330, %v372
        %v391 = vcombine.low %v242, %v244
        %v392 = vcombine.low %v246, %v248
        %v393 = vcombine.low %v258, %v260
        %v394 = vcombine.low %v262, %v264
        %v395 = vcombine.low %v274, %v276
        %v396 = vcombine.low %v278, %v280
        %v403 = vsel %vm306, %v391, 0.0
        %404 = vadd.xlane.f32.xlu0 %v403
        %v405 = vpop.xlane.xlu0 %404
        %v406 = vsel %vm306, %v392, 0.0
        %407 = vadd.xlane.f32.xlu0 %v406
        %v408 = vpop.xlane.xlu0 %407
        %v409 = vsel %vm306, %v393, 0.0
        %410 = vadd.xlane.f32.xlu0 %v409
        %v411 = vpop.xlane.xlu0 %410
        %v412 = vsel %vm306, %v394, 0.0
        %413 = vadd.xlane.f32.xlu0 %v412
        %v414 = vpop.xlane.xlu0 %413
        %v415 = vsel %vm306, %v395, 0.0
        %416 = vadd.xlane.f32.xlu0 %v415
        %v417 = vpop.xlane.xlu0 %416
        %v418 = vsel %vm306, %v396, 0.0
        %419 = vadd.xlane.f32.xlu0 %v418
        %v420 = vpop.xlane.xlu0 %419
        %v421 = vadd.f32 %v373, %v405
        %v422 = vadd.f32 %v374, %v408
        %v423 = vadd.f32 %v375, %v411
        %v424 = vadd.f32 %v376, %v414
        %v425 = vadd.f32 %v377, %v417
        %v426 = vadd.f32 %v378, %v420
        %v439 = vcombine.low %v243, %v245
        %v440 = vcombine.low %v247, %v249
        %v441 = vcombine.low %v259, %v261
        %v442 = vcombine.low %v263, %v265
        %v443 = vcombine.low %v275, %v277
        %v444 = vcombine.low %v279, %v281
        %v451 = vsel %vm306, %v439, 0.0
        %452 = vadd.xlane.f32.xlu0 %v451
        %v453 = vpop.xlane.xlu0 %452
        %v454 = vsel %vm306, %v440, 0.0
        %455 = vadd.xlane.f32.xlu0 %v454
        %v456 = vpop.xlane.xlu0 %455
        %v457 = vsel %vm306, %v441, 0.0
        %458 = vadd.xlane.f32.xlu0 %v457
        %v459 = vpop.xlane.xlu0 %458
        %v460 = vsel %vm306, %v442, 0.0
        %461 = vadd.xlane.f32.xlu0 %v460
        %v462 = vpop.xlane.xlu0 %461
        %v463 = vsel %vm306, %v443, 0.0
        %464 = vadd.xlane.f32.xlu0 %v463
        %v465 = vpop.xlane.xlu0 %464
        %v466 = vsel %vm306, %v444, 0.0
        %467 = vadd.xlane.f32.xlu0 %v466
        %v468 = vpop.xlane.xlu0 %467
        %v469 = vadd.f32 %v421, %v453
        %v470 = vadd.f32 %v422, %v456
        %v471 = vadd.f32 %v423, %v459
        %v472 = vadd.f32 %v424, %v462
        %v473 = vadd.f32 %v425, %v465
        %v474 = vadd.f32 %v426, %v468
        %v475 = vmul.f32 %v469, 0.015625
        %v476 = vmul.f32 %v470, 0.015625
        %v477 = vmul.f32 %v471, 0.015625
        %v478 = vmul.f32 %v472, 0.015625
        %v479 = vmul.f32 %v473, 0.015625
        %v480 = vmul.f32 %v474, 0.015625
        %v488 = vunpack.c.l.s4 839922192
        %v489 = vunpack.c.0.s8 %v488
        %v490 = vlaneseq
        %v491 = vshrl.u32 %v490, 7
        %v492 = vsub.s32 %v489, %v491
        %v493 = vrot.slane %v475, %v492
        %v495 = vunpack.c.l.s4 1985246804
        %v496 = vunpack.c.0.s8 %v495
        %v497 = vlaneseq
        %v498 = vshrl.u32 %v497, 7
        %v499 = vsub.s32 %v496, %v498
        %v500 = vrot.slane %v475, %v499
        %v502 = vunpack.c.l.s4 839922192
        %v503 = vunpack.c.0.s8 %v502
        %v504 = vlaneseq
        %v505 = vshrl.u32 %v504, 7
        %v506 = vsub.s32 %v503, %v505
        %v507 = vrot.slane %v476, %v506
        %v509 = vunpack.c.l.s4 1985246804
        %v510 = vunpack.c.0.s8 %v509
        %v511 = vlaneseq
        %v512 = vshrl.u32 %v511, 7
        %v513 = vsub.s32 %v510, %v512
        %v514 = vrot.slane %v476, %v513
        %v516 = vunpack.c.l.s4 839922192
        %v517 = vunpack.c.0.s8 %v516
        %v518 = vlaneseq
        %v519 = vshrl.u32 %v518, 7
        %v520 = vsub.s32 %v517, %v519
        %v521 = vrot.slane %v477, %v520
        %v523 = vunpack.c.l.s4 1985246804
        %v524 = vunpack.c.0.s8 %v523
        %v525 = vlaneseq
        %v526 = vshrl.u32 %v525, 7
        %v527 = vsub.s32 %v524, %v526
        %v528 = vrot.slane %v477, %v527
        %v530 = vunpack.c.l.s4 839922192
        %v531 = vunpack.c.0.s8 %v530
        %v532 = vlaneseq
        %v533 = vshrl.u32 %v532, 7
        %v534 = vsub.s32 %v531, %v533
        %v535 = vrot.slane %v478, %v534
        %v537 = vunpack.c.l.s4 1985246804
        %v538 = vunpack.c.0.s8 %v537
        %v539 = vlaneseq
        %v540 = vshrl.u32 %v539, 7
        %v541 = vsub.s32 %v538, %v540
        %v542 = vrot.slane %v478, %v541
        %v544 = vunpack.c.l.s4 839922192
        %v545 = vunpack.c.0.s8 %v544
        %v546 = vlaneseq
        %v547 = vshrl.u32 %v546, 7
        %v548 = vsub.s32 %v545, %v547
        %v549 = vrot.slane %v479, %v548
        %v551 = vunpack.c.l.s4 1985246804
        %v552 = vunpack.c.0.s8 %v551
        %v553 = vlaneseq
        %v554 = vshrl.u32 %v553, 7
        %v555 = vsub.s32 %v552, %v554
        %v556 = vrot.slane %v479, %v555
        %v558 = vunpack.c.l.s4 839922192
        %v559 = vunpack.c.0.s8 %v558
        %v560 = vlaneseq
        %v561 = vshrl.u32 %v560, 7
        %v562 = vsub.s32 %v559, %v561
        %v563 = vrot.slane %v480, %v562
        %v565 = vunpack.c.l.s4 1985246804
        %v566 = vunpack.c.0.s8 %v565
        %v567 = vlaneseq
        %v568 = vshrl.u32 %v567, 7
        %v569 = vsub.s32 %v566, %v568
        %v570 = vrot.slane %v480, %v569
        %v583 = vsub.f32 %v234, %v493
        %v584 = vsub.f32 %v236, %v500
        %v585 = vsub.f32 %v238, %v507
        %v586 = vsub.f32 %v240, %v514
        %v587 = vsub.f32 %v250, %v521
        %v588 = vsub.f32 %v252, %v528
        %v589 = vsub.f32 %v254, %v535
        %v590 = vsub.f32 %v256, %v542
        %v591 = vsub.f32 %v266, %v549
        %v592 = vsub.f32 %v268, %v556
        %v593 = vsub.f32 %v270, %v563
        %v594 = vsub.f32 %v272, %v570
        %v595 = vmul.f32 %v583, %v583
        %v596 = vmul.f32 %v584, %v584
        %v597 = vmul.f32 %v585, %v585
        %v598 = vmul.f32 %v586, %v586
        %v599 = vmul.f32 %v587, %v587
        %v600 = vmul.f32 %v588, %v588
        %v601 = vmul.f32 %v589, %v589
        %v602 = vmul.f32 %v590, %v590
        %v603 = vmul.f32 %v591, %v591
        %v604 = vmul.f32 %v592, %v592
        %v605 = vmul.f32 %v593, %v593
        %v606 = vmul.f32 %v594, %v594
        %v619 = vcombine.low %v595, %v596
        %v620 = vcombine.low %v597, %v598
        %v621 = vcombine.low %v599, %v600
        %v622 = vcombine.low %v601, %v602
        %v623 = vcombine.low %v603, %v604
        %v624 = vcombine.low %v605, %v606
        %v631 = vsel %vm306, %v619, 0.0
        %632 = vadd.xlane.f32.xlu0 %v631
        %v633 = vpop.xlane.xlu0 %632
        %v634 = vsel %vm306, %v620, 0.0
        %635 = vadd.xlane.f32.xlu0 %v634
        %v636 = vpop.xlane.xlu0 %635
        %v637 = vsel %vm306, %v621, 0.0
        %638 = vadd.xlane.f32.xlu0 %v637
        %v639 = vpop.xlane.xlu0 %638
        %v640 = vsel %vm306, %v622, 0.0
        %641 = vadd.xlane.f32.xlu0 %v640
        %v642 = vpop.xlane.xlu0 %641
        %v643 = vsel %vm306, %v623, 0.0
        %644 = vadd.xlane.f32.xlu0 %v643
        %v645 = vpop.xlane.xlu0 %644
        %v646 = vsel %vm306, %v624, 0.0
        %647 = vadd.xlane.f32.xlu0 %v646
        %v648 = vpop.xlane.xlu0 %647
        %v649 = vadd.f32 %v633, 0.0
        %v650 = vadd.f32 %v636, 0.0
        %v651 = vadd.f32 %v639, 0.0
        %v652 = vadd.f32 %v642, 0.0
        %v653 = vadd.f32 %v645, 0.0
        %v654 = vadd.f32 %v648, 0.0
        %v655 = vsub.f32 %v235, %v493
        %v656 = vsub.f32 %v237, %v500
        %v657 = vsub.f32 %v239, %v507
        %v658 = vsub.f32 %v241, %v514
        %v659 = vsub.f32 %v251, %v521
        %v660 = vsub.f32 %v253, %v528
        %v661 = vsub.f32 %v255, %v535
        %v662 = vsub.f32 %v257, %v542
        %v663 = vsub.f32 %v267, %v549
        %v664 = vsub.f32 %v269, %v556
        %v665 = vsub.f32 %v271, %v563
        %v666 = vsub.f32 %v273, %v570
        %v667 = vmul.f32 %v655, %v655
        %v668 = vmul.f32 %v656, %v656
        %v669 = vmul.f32 %v657, %v657
        %v670 = vmul.f32 %v658, %v658
        %v671 = vmul.f32 %v659, %v659
        %v672 = vmul.f32 %v660, %v660
        %v673 = vmul.f32 %v661, %v661
        %v674 = vmul.f32 %v662, %v662
        %v675 = vmul.f32 %v663, %v663
        %v676 = vmul.f32 %v664, %v664
        %v677 = vmul.f32 %v665, %v665
        %v678 = vmul.f32 %v666, %v666
        %v691 = vcombine.low %v667, %v668
        %v692 = vcombine.low %v669, %v670
        %v693 = vcombine.low %v671, %v672
        %v694 = vcombine.low %v673, %v674
        %v695 = vcombine.low %v675, %v676
        %v696 = vcombine.low %v677, %v678
        %v703 = vsel %vm306, %v691, 0.0
        %704 = vadd.xlane.f32.xlu0 %v703
        %v705 = vpop.xlane.xlu0 %704
        %v706 = vsel %vm306, %v692, 0.0
        %707 = vadd.xlane.f32.xlu0 %v706
        %v708 = vpop.xlane.xlu0 %707
        %v709 = vsel %vm306, %v693, 0.0
        %710 = vadd.xlane.f32.xlu0 %v709
        %v711 = vpop.xlane.xlu0 %710
        %v712 = vsel %vm306, %v694, 0.0
        %713 = vadd.xlane.f32.xlu0 %v712
        %v714 = vpop.xlane.xlu0 %713
        %v715 = vsel %vm306, %v695, 0.0
        %716 = vadd.xlane.f32.xlu0 %v715
        %v717 = vpop.xlane.xlu0 %716
        %v718 = vsel %vm306, %v696, 0.0
        %719 = vadd.xlane.f32.xlu0 %v718
        %v720 = vpop.xlane.xlu0 %719
        %v721 = vadd.f32 %v649, %v705
        %v722 = vadd.f32 %v650, %v708
        %v723 = vadd.f32 %v651, %v711
        %v724 = vadd.f32 %v652, %v714
        %v725 = vadd.f32 %v653, %v717
        %v726 = vadd.f32 %v654, %v720
        %v727 = vsub.f32 %v242, %v493
        %v728 = vsub.f32 %v244, %v500
        %v729 = vsub.f32 %v246, %v507
        %v730 = vsub.f32 %v248, %v514
        %v731 = vsub.f32 %v258, %v521
        %v732 = vsub.f32 %v260, %v528
        %v733 = vsub.f32 %v262, %v535
        %v734 = vsub.f32 %v264, %v542
        %v735 = vsub.f32 %v274, %v549
        %v736 = vsub.f32 %v276, %v556
        %v737 = vsub.f32 %v278, %v563
        %v738 = vsub.f32 %v280, %v570
        %v739 = vmul.f32 %v727, %v727
        %v740 = vmul.f32 %v728, %v728
        %v741 = vmul.f32 %v729, %v729
        %v742 = vmul.f32 %v730, %v730
        %v743 = vmul.f32 %v731, %v731
        %v744 = vmul.f32 %v732, %v732
        %v745 = vmul.f32 %v733, %v733
        %v746 = vmul.f32 %v734, %v734
        %v747 = vmul.f32 %v735, %v735
        %v748 = vmul.f32 %v736, %v736
        %v749 = vmul.f32 %v737, %v737
        %v750 = vmul.f32 %v738, %v738
        %v763 = vcombine.low %v739, %v740
        %v764 = vcombine.low %v741, %v742
        %v765 = vcombine.low %v743, %v744
        %v766 = vcombine.low %v745, %v746
        %v767 = vcombine.low %v747, %v748
        %v768 = vcombine.low %v749, %v750
        %v775 = vsel %vm306, %v763, 0.0
        %776 = vadd.xlane.f32.xlu0 %v775
        %v777 = vpop.xlane.xlu0 %776
        %v778 = vsel %vm306, %v764, 0.0
        %779 = vadd.xlane.f32.xlu0 %v778
        %v780 = vpop.xlane.xlu0 %779
        %v781 = vsel %vm306, %v765, 0.0
        %782 = vadd.xlane.f32.xlu0 %v781
        %v783 = vpop.xlane.xlu0 %782
        %v784 = vsel %vm306, %v766, 0.0
        %785 = vadd.xlane.f32.xlu0 %v784
        %v786 = vpop.xlane.xlu0 %785
        %v787 = vsel %vm306, %v767, 0.0
        %788 = vadd.xlane.f32.xlu0 %v787
        %v789 = vpop.xlane.xlu0 %788
        %v790 = vsel %vm306, %v768, 0.0
        %791 = vadd.xlane.f32.xlu0 %v790
        %v792 = vpop.xlane.xlu0 %791
        %v793 = vadd.f32 %v721, %v777
        %v794 = vadd.f32 %v722, %v780
        %v795 = vadd.f32 %v723, %v783
        %v796 = vadd.f32 %v724, %v786
        %v797 = vadd.f32 %v725, %v789
        %v798 = vadd.f32 %v726, %v792
        %v799 = vsub.f32 %v243, %v493
        %v800 = vsub.f32 %v245, %v500
        %v801 = vsub.f32 %v247, %v507
        %v802 = vsub.f32 %v249, %v514
        %v803 = vsub.f32 %v259, %v521
        %v804 = vsub.f32 %v261, %v528
        %v805 = vsub.f32 %v263, %v535
        %v806 = vsub.f32 %v265, %v542
        %v807 = vsub.f32 %v275, %v549
        %v808 = vsub.f32 %v277, %v556
        %v809 = vsub.f32 %v279, %v563
        %v810 = vsub.f32 %v281, %v570
        %v811 = vmul.f32 %v799, %v799
        %v812 = vmul.f32 %v800, %v800
        %v813 = vmul.f32 %v801, %v801
        %v814 = vmul.f32 %v802, %v802
        %v815 = vmul.f32 %v803, %v803
        %v816 = vmul.f32 %v804, %v804
        %v817 = vmul.f32 %v805, %v805
        %v818 = vmul.f32 %v806, %v806
        %v819 = vmul.f32 %v807, %v807
        %v820 = vmul.f32 %v808, %v808
        %v821 = vmul.f32 %v809, %v809
        %v822 = vmul.f32 %v810, %v810
        %v835 = vcombine.low %v811, %v812
        %v836 = vcombine.low %v813, %v814
        %v837 = vcombine.low %v815, %v816
        %v838 = vcombine.low %v817, %v818
        %v839 = vcombine.low %v819, %v820
        %v840 = vcombine.low %v821, %v822
        %v847 = vsel %vm306, %v835, 0.0
        %848 = vadd.xlane.f32.xlu0 %v847
        %v849 = vpop.xlane.xlu0 %848
        %v850 = vsel %vm306, %v836, 0.0
        %851 = vadd.xlane.f32.xlu0 %v850
        %v852 = vpop.xlane.xlu0 %851
        %v853 = vsel %vm306, %v837, 0.0
        %854 = vadd.xlane.f32.xlu0 %v853
        %v855 = vpop.xlane.xlu0 %854
        %v856 = vsel %vm306, %v838, 0.0
        %857 = vadd.xlane.f32.xlu0 %v856
        %v858 = vpop.xlane.xlu0 %857
        %v859 = vsel %vm306, %v839, 0.0
        %860 = vadd.xlane.f32.xlu0 %v859
        %v861 = vpop.xlane.xlu0 %860
        %v862 = vsel %vm306, %v840, 0.0
        %863 = vadd.xlane.f32.xlu0 %v862
        %v864 = vpop.xlane.xlu0 %863
        %v865 = vadd.f32 %v793, %v849
        %v866 = vadd.f32 %v794, %v852
        %v867 = vadd.f32 %v795, %v855
        %v868 = vadd.f32 %v796, %v858
        %v869 = vadd.f32 %v797, %v861
        %v870 = vadd.f32 %v798, %v864
        %v871 = vmul.f32 %v865, 0.015625
        %v872 = vmul.f32 %v866, 0.015625
        %v873 = vmul.f32 %v867, 0.015625
        %v874 = vmul.f32 %v868, 0.015625
        %v875 = vmul.f32 %v869, 0.015625
        %v876 = vmul.f32 %v870, 0.015625
        %v877 = vadd.f32 %v871, 1e-05
        %v878 = vadd.f32 %v872, 1e-05
        %v879 = vadd.f32 %v873, 1e-05
        %v880 = vadd.f32 %v874, 1e-05
        %v881 = vadd.f32 %v875, 1e-05
        %v882 = vadd.f32 %v876, 1e-05
        %v883 = vrsqrt.pop %v877
        %v884 = vrsqrt.pop %v878
        %v885 = vrsqrt.pop %v879
        %v886 = vrsqrt.pop %v880
        %v887 = vrsqrt.pop %v881
        %v888 = vrsqrt.pop %v882
        %v896 = vunpack.c.l.s4 839922192
        %v897 = vunpack.c.0.s8 %v896
        %v898 = vlaneseq
        %v899 = vshrl.u32 %v898, 7
        %v900 = vsub.s32 %v897, %v899
        %v901 = vrot.slane %v883, %v900
        %v903 = vunpack.c.l.s4 1985246804
        %v904 = vunpack.c.0.s8 %v903
        %v905 = vlaneseq
        %v906 = vshrl.u32 %v905, 7
        %v907 = vsub.s32 %v904, %v906
        %v908 = vrot.slane %v883, %v907
        %v910 = vunpack.c.l.s4 839922192
        %v911 = vunpack.c.0.s8 %v910
        %v912 = vlaneseq
        %v913 = vshrl.u32 %v912, 7
        %v914 = vsub.s32 %v911, %v913
        %v915 = vrot.slane %v884, %v914
        %v917 = vunpack.c.l.s4 1985246804
        %v918 = vunpack.c.0.s8 %v917
        %v919 = vlaneseq
        %v920 = vshrl.u32 %v919, 7
        %v921 = vsub.s32 %v918, %v920
        %v922 = vrot.slane %v884, %v921
        %v924 = vunpack.c.l.s4 839922192
        %v925 = vunpack.c.0.s8 %v924
        %v926 = vlaneseq
        %v927 = vshrl.u32 %v926, 7
        %v928 = vsub.s32 %v925, %v927
        %v929 = vrot.slane %v885, %v928
        %v931 = vunpack.c.l.s4 1985246804
        %v932 = vunpack.c.0.s8 %v931
        %v933 = vlaneseq
        %v934 = vshrl.u32 %v933, 7
        %v935 = vsub.s32 %v932, %v934
        %v936 = vrot.slane %v885, %v935
        %v938 = vunpack.c.l.s4 839922192
        %v939 = vunpack.c.0.s8 %v938
        %v940 = vlaneseq
        %v941 = vshrl.u32 %v940, 7
        %v942 = vsub.s32 %v939, %v941
        %v943 = vrot.slane %v886, %v942
        %v945 = vunpack.c.l.s4 1985246804
        %v946 = vunpack.c.0.s8 %v945
        %v947 = vlaneseq
        %v948 = vshrl.u32 %v947, 7
        %v949 = vsub.s32 %v946, %v948
        %v950 = vrot.slane %v886, %v949
        %v952 = vunpack.c.l.s4 839922192
        %v953 = vunpack.c.0.s8 %v952
        %v954 = vlaneseq
        %v955 = vshrl.u32 %v954, 7
        %v956 = vsub.s32 %v953, %v955
        %v957 = vrot.slane %v887, %v956
        %v959 = vunpack.c.l.s4 1985246804
        %v960 = vunpack.c.0.s8 %v959
        %v961 = vlaneseq
        %v962 = vshrl.u32 %v961, 7
        %v963 = vsub.s32 %v960, %v962
        %v964 = vrot.slane %v887, %v963
        %v966 = vunpack.c.l.s4 839922192
        %v967 = vunpack.c.0.s8 %v966
        %v968 = vlaneseq
        %v969 = vshrl.u32 %v968, 7
        %v970 = vsub.s32 %v967, %v969
        %v971 = vrot.slane %v888, %v970
        %v973 = vunpack.c.l.s4 1985246804
        %v974 = vunpack.c.0.s8 %v973
        %v975 = vlaneseq
        %v976 = vshrl.u32 %v975, 7
        %v977 = vsub.s32 %v974, %v976
        %v978 = vrot.slane %v888, %v977
        %v991 = vmul.f32 %v583, %v901
        %v992 = vmul.f32 %v584, %v908
        %v993 = vmul.f32 %v585, %v915
        %v994 = vmul.f32 %v586, %v922
        %v995 = vmul.f32 %v587, %v929
        %v996 = vmul.f32 %v588, %v936
        %v997 = vmul.f32 %v589, %v943
        %v998 = vmul.f32 %v590, %v950
        %v999 = vmul.f32 %v591, %v957
        %v1000 = vmul.f32 %v592, %v964
        %v1001 = vmul.f32 %v593, %v971
        %v1002 = vmul.f32 %v594, %v978
        %v1003 = vld [vmem:[%s1] sm:$0x1]
        %v1005 = vlaneseq
        %v1006 = vshrl.u32 %v1005, 7
        %v1007 = vsub.s32 0, %v1006
        %v1008 = vrot.slane %v1003, %v1007
        %v1010 = vcombine.high %v1008, %v1008
        %v1012 = vmul.f32 %v991, %v1008
        %v1013 = vmul.f32 %v992, %v1010
        %v1014 = vmul.f32 %v993, %v1008
        %v1015 = vmul.f32 %v994, %v1010
        %v1016 = vmul.f32 %v995, %v1008
        %v1017 = vmul.f32 %v996, %v1010
        %v1018 = vmul.f32 %v997, %v1008
        %v1019 = vmul.f32 %v998, %v1010
        %v1020 = vmul.f32 %v999, %v1008
        %v1021 = vmul.f32 %v1000, %v1010
        %v1022 = vmul.f32 %v1001, %v1008
        %v1023 = vmul.f32 %v1002, %v1010
        %v1024 = vld [vmem:[%s2] sm:$0x1]
        %v1026 = vlaneseq
        %v1027 = vshrl.u32 %v1026, 7
        %v1028 = vsub.s32 0, %v1027
        %v1029 = vrot.slane %v1024, %v1028
        %v1031 = vcombine.high %v1029, %v1029
        %v1033 = vadd.f32 %v1012, %v1029
        %v1034 = vadd.f32 %v1013, %v1031
        %v1035 = vadd.f32 %v1014, %v1029
        %v1036 = vadd.f32 %v1015, %v1031
        %v1037 = vadd.f32 %v1016, %v1029
        %v1038 = vadd.f32 %v1017, %v1031
        %v1039 = vadd.f32 %v1018, %v1029
        %v1040 = vadd.f32 %v1019, %v1031
        %v1041 = vadd.f32 %v1020, %v1029
        %v1042 = vadd.f32 %v1021, %v1031
        %v1043 = vadd.f32 %v1022, %v1029
        %v1044 = vadd.f32 %v1023, %v1031
        %v1057 = vcombine.low %v1033, %v1034
        %v1058 = vcombine.low %v1035, %v1036
        %v1059 = vcombine.low %v1037, %v1038
        %v1060 = vcombine.low %v1039, %v1040
        %v1061 = vcombine.low %v1041, %v1042
        %v1062 = vcombine.low %v1043, %v1044
        %v1069 = vpack.c.bf16 %v1058, %v1057
        %v1070 = vpack.c.bf16 %v1060, %v1059
        %v1071 = vpack.c.bf16 %v1062, %v1061
        %v1072 = vld [vmem:[%s3] sm:$0xf]
        %v1073 = vld [vmem:[%s3 + $0x4] sm:$0xf]
        %v1074 = vmul.f32 %v655, %v901
        %v1075 = vmul.f32 %v656, %v908
        %v1076 = vmul.f32 %v657, %v915
        %v1077 = vmul.f32 %v658, %v922
        %v1078 = vmul.f32 %v659, %v929
        %v1079 = vmul.f32 %v660, %v936
        %v1080 = vmul.f32 %v661, %v943
        %v1081 = vmul.f32 %v662, %v950
        %v1082 = vmul.f32 %v663, %v957
        %v1083 = vmul.f32 %v664, %v964
        %v1084 = vmul.f32 %v665, %v971
        %v1085 = vmul.f32 %v666, %v978
        %s1086 = scalar_lea.vmem %s1, 1
        %v1087 = vld [vmem:[%s1086] sm:$0x1]
        %v1089 = vlaneseq
        %v1090 = vshrl.u32 %v1089, 7
        %v1091 = vsub.s32 0, %v1090
        %v1092 = vrot.slane %v1087, %v1091
        %v1094 = vcombine.high %v1092, %v1092
        %v1096 = vmul.f32 %v1074, %v1092
        %v1097 = vmul.f32 %v1075, %v1094
        %v1098 = vmul.f32 %v1076, %v1092
        %v1099 = vmul.f32 %v1077, %v1094
        %v1100 = vmul.f32 %v1078, %v1092
        %v1101 = vmul.f32 %v1079, %v1094
        %v1102 = vmul.f32 %v1080, %v1092
        %v1103 = vmul.f32 %v1081, %v1094
        %v1104 = vmul.f32 %v1082, %v1092
        %v1105 = vmul.f32 %v1083, %v1094
        %v1106 = vmul.f32 %v1084, %v1092
        %v1107 = vmul.f32 %v1085, %v1094
        %s1108 = scalar_lea.vmem %s2, 1
        %v1109 = vld [vmem:[%s1108] sm:$0x1]
        %v1111 = vlaneseq
        %v1112 = vshrl.u32 %v1111, 7
        %v1113 = vsub.s32 0, %v1112
        %v1114 = vrot.slane %v1109, %v1113
        %v1116 = vcombine.high %v1114, %v1114
        %v1118 = vadd.f32 %v1096, %v1114
        %v1119 = vadd.f32 %v1097, %v1116
        %v1120 = vadd.f32 %v1098, %v1114
        %v1121 = vadd.f32 %v1099, %v1116
        %v1122 = vadd.f32 %v1100, %v1114
        %v1123 = vadd.f32 %v1101, %v1116
        %v1124 = vadd.f32 %v1102, %v1114
        %v1125 = vadd.f32 %v1103, %v1116
        %v1126 = vadd.f32 %v1104, %v1114
        %v1127 = vadd.f32 %v1105, %v1116
        %v1128 = vadd.f32 %v1106, %v1114
        %v1129 = vadd.f32 %v1107, %v1116
        %v1142 = vcombine.low %v1118, %v1119
        %v1143 = vcombine.low %v1120, %v1121
        %v1144 = vcombine.low %v1122, %v1123
        %v1145 = vcombine.low %v1124, %v1125
        %v1146 = vcombine.low %v1126, %v1127
        %v1147 = vcombine.low %v1128, %v1129
        %v1154 = vpack.c.bf16 %v1143, %v1142
        %v1155 = vpack.c.bf16 %v1145, %v1144
        %v1156 = vpack.c.bf16 %v1147, %v1146
        %s1157 = scalar_lea.vmem %s3, 8
        %v1158 = vld [vmem:[%s1157] sm:$0xf]
        %v1159 = vld [vmem:[%s1157 + $0x4] sm:$0xf]
        %v1162 = vunpack.c.l.b16 %v1158
        %v1163 = vunpack.c.l.b16 %v1159
        %v1164 = vpack.c.b16 %v1163, %v1162
        %v1167 = vsel %vm306, %v1154, 0
        %v1170 = vsel %vm306, %v1155, 0
        %v1173 = vsel %vm306, %v1156, 0
        %1175 = vmatprep.subr.bf16.mxu0 0
        %1176 = vmatpush1.bf16.msra.mxu0 %v1164
        %1177 = vmatprep.subr.bf16.mxu0 0
        %1178 = vmatpush1.bf16.msra.mxu0 0
        %1179 = vmatprep.subr.bf16.mxu0 0
        %1180 = vmatpush1.bf16.msra.mxu0 0
        %1181 = vmatprep.subr.bf16.mxu0 0
        %1182 = vmatpush1.bf16.msra.mxu0 0
        %1183 = vmatprep.subr.bf16.mxu0 0
        %1184 = vmatpush1.bf16.msra.mxu0 0
        %1185 = vmatprep.subr.bf16.mxu0 0
        %1186 = vmatpush1.bf16.msra.mxu0 0
        %1187 = vmatprep.subr.bf16.mxu0 0
        %1188 = vmatpush1.bf16.msra.mxu0 0
        %1189 = vmatprep.subr.bf16.mxu0 0
        %1190 = vmatpush1.bf16.msra.mxu0 0
        %1191 = vmatprep.subr.bf16.mxu0 0
        %1192 = vmatpush1.bf16.msra.mxu0 0
        %1193 = vmatprep.subr.bf16.mxu0 0
        %1194 = vmatpush1.bf16.msra.mxu0 0
        %1195 = vmatprep.subr.bf16.mxu0 0
        %1196 = vmatpush1.bf16.msra.mxu0 0
        %1197 = vmatprep.subr.bf16.mxu0 0
        %1198 = vmatpush1.bf16.msra.mxu0 0
        %1199 = vmatprep.subr.bf16.mxu0 0
        %1200 = vmatpush1.bf16.msra.mxu0 0
        %1201 = vmatprep.subr.bf16.mxu0 0
        %1202 = vmatpush1.bf16.msra.mxu0 0
        %1203 = vmatprep.subr.bf16.mxu0 0
        %1204 = vmatpush1.bf16.msra.mxu0 0
        %1205 = vmatprep.subr.bf16.mxu0 0
        %1206 = vmatpush1.bf16.msra.mxu0 0
        %1207 = vmatprep.mubr.bf16.mxu0 0
        %1208 = vmatmul.mubr.bf16.gmra.mrb[0].mxu0 %v1167
        %v1209 = vpop.f32.mrb[0].mxu0
        %v1210 = vadd.f32 0.0, %v1209
        %v1211 = vpop.f32.mrb[0].mxu0
        %v1212 = vpop.f32.mrb[0].mxu0
        %v1213 = vadd.f32 0.0, %v1212
        %v1214 = vpop.f32.mrb[0].mxu0
        %1215 = vmatprep.mubr.bf16.mxu0 0
        %1216 = vmatmul.mubr.bf16.gmra.mrb[0].mxu0 %v1170
        %v1217 = vpop.f32.mrb[0].mxu0
        %v1218 = vadd.f32 0.0, %v1217
        %v1219 = vpop.f32.mrb[0].mxu0
        %v1220 = vpop.f32.mrb[0].mxu0
        %v1221 = vadd.f32 0.0, %v1220
        %v1222 = vpop.f32.mrb[0].mxu0
        %1223 = vmatprep.mubr.bf16.mxu0 0
        %1224 = vmatmul.mubr.bf16.gmra.mrb[0].mxu0 %v1173
        %v1225 = vpop.f32.mrb[0].mxu0
        %v1226 = vadd.f32 0.0, %v1225
        %v1227 = vpop.f32.mrb[0].mxu0
        %v1228 = vpop.f32.mrb[0].mxu0
        %v1229 = vadd.f32 0.0, %v1228
        %v1230 = vpop.f32.mrb[0].mxu0
        %1231 = vdwg.mxu0
        %v1234 = vunpack.c.l.b16 %v1072
        %v1235 = vunpack.c.l.b16 %v1073
        %v1236 = vpack.c.b16 %v1235, %v1234
        %v1239 = vsel %vm306, %v1069, 0
        %v1242 = vsel %vm306, %v1070, 0
        %v1245 = vsel %vm306, %v1071, 0
        %1247 = vmatprep.subr.bf16.mxu0 0
        %1248 = vmatpush1.bf16.msra.mxu0 %v1236
        %1249 = vmatprep.subr.bf16.mxu0 0
        %1250 = vmatpush1.bf16.msra.mxu0 0
        %1251 = vmatprep.subr.bf16.mxu0 0
        %1252 = vmatpush1.bf16.msra.mxu0 0
        %1253 = vmatprep.subr.bf16.mxu0 0
        %1254 = vmatpush1.bf16.msra.mxu0 0
        %1255 = vmatprep.subr.bf16.mxu0 0
        %1256 = vmatpush1.bf16.msra.mxu0 0
        %1257 = vmatprep.subr.bf16.mxu0 0
        %1258 = vmatpush1.bf16.msra.mxu0 0
        %1259 = vmatprep.subr.bf16.mxu0 0
        %1260 = vmatpush1.bf16.msra.mxu0 0
        %1261 = vmatprep.subr.bf16.mxu0 0
        %1262 = vmatpush1.bf16.msra.mxu0 0
        %1263 = vmatprep.subr.bf16.mxu0 0
        %1264 = vmatpush1.bf16.msra.mxu0 0
        %1265 = vmatprep.subr.bf16.mxu0 0
        %1266 = vmatpush1.bf16.msra.mxu0 0
        %1267 = vmatprep.subr.bf16.mxu0 0
        %1268 = vmatpush1.bf16.msra.mxu0 0
        %1269 = vmatprep.subr.bf16.mxu0 0
        %1270 = vmatpush1.bf16.msra.mxu0 0
        %1271 = vmatprep.subr.bf16.mxu0 0
        %1272 = vmatpush1.bf16.msra.mxu0 0
        %1273 = vmatprep.subr.bf16.mxu0 0
        %1274 = vmatpush1.bf16.msra.mxu0 0
        %1275 = vmatprep.subr.bf16.mxu0 0
        %1276 = vmatpush1.bf16.msra.mxu0 0
        %1277 = vmatprep.subr.bf16.mxu0 0
        %1278 = vmatpush1.bf16.msra.mxu0 0
        %1279 = vmatprep.mubr.bf16.mxu0 0
        %1280 = vmatmul.mubr.bf16.gmra.mrb[0].mxu0 %v1239
        %v1281 = vpop.f32.mrb[0].mxu0
        %v1282 = vadd.f32 %v1210, %v1281
        %v1283 = vpop.f32.mrb[0].mxu0
        %v1284 = vpop.f32.mrb[0].mxu0
        %v1285 = vadd.f32 %v1213, %v1284
        %v1286 = vpop.f32.mrb[0].mxu0
        %1287 = vmatprep.mubr.bf16.mxu0 0
        %1288 = vmatmul.mubr.bf16.gmra.mrb[0].mxu0 %v1242
        %v1289 = vpop.f32.mrb[0].mxu0
        %v1290 = vadd.f32 %v1218, %v1289
        %v1291 = vpop.f32.mrb[0].mxu0
        %v1292 = vpop.f32.mrb[0].mxu0
        %v1293 = vadd.f32 %v1221, %v1292
        %v1294 = vpop.f32.mrb[0].mxu0
        %1295 = vmatprep.mubr.bf16.mxu0 0
        %1296 = vmatmul.mubr.bf16.gmra.mrb[0].mxu0 %v1245
        %v1297 = vpop.f32.mrb[0].mxu0
        %v1298 = vadd.f32 %v1226, %v1297
        %v1299 = vpop.f32.mrb[0].mxu0
        %v1300 = vpop.f32.mrb[0].mxu0
        %v1301 = vadd.f32 %v1229, %v1300
        %v1302 = vpop.f32.mrb[0].mxu0
        %1303 = vdwg.mxu0
        %v1304 = vmul.f32 %v727, %v901
        %v1305 = vmul.f32 %v728, %v908
        %v1306 = vmul.f32 %v729, %v915
        %v1307 = vmul.f32 %v730, %v922
        %v1308 = vmul.f32 %v731, %v929
        %v1309 = vmul.f32 %v732, %v936
        %v1310 = vmul.f32 %v733, %v943
        %v1311 = vmul.f32 %v734, %v950
        %v1312 = vmul.f32 %v735, %v957
        %v1313 = vmul.f32 %v736, %v964
        %v1314 = vmul.f32 %v737, %v971
        %v1315 = vmul.f32 %v738, %v978
        %s1316 = scalar_lea.vmem %s1, 2
        %v1317 = vld [vmem:[%s1316] sm:$0x1]
        %v1319 = vlaneseq
        %v1320 = vshrl.u32 %v1319, 7
        %v1321 = vsub.s32 0, %v1320
        %v1322 = vrot.slane %v1317, %v1321
        %v1324 = vcombine.high %v1322, %v1322
        %v1326 = vmul.f32 %v1304, %v1322
        %v1327 = vmul.f32 %v1305, %v1324
        %v1328 = vmul.f32 %v1306, %v1322
        %v1329 = vmul.f32 %v1307, %v1324
        %v1330 = vmul.f32 %v1308, %v1322
        %v1331 = vmul.f32 %v1309, %v1324
        %v1332 = vmul.f32 %v1310, %v1322
        %v1333 = vmul.f32 %v1311, %v1324
        %v1334 = vmul.f32 %v1312, %v1322
        %v1335 = vmul.f32 %v1313, %v1324
        %v1336 = vmul.f32 %v1314, %v1322
        %v1337 = vmul.f32 %v1315, %v1324
        %s1338 = scalar_lea.vmem %s2, 2
        %v1339 = vld [vmem:[%s1338] sm:$0x1]
        %v1341 = vlaneseq
        %v1342 = vshrl.u32 %v1341, 7
        %v1343 = vsub.s32 0, %v1342
        %v1344 = vrot.slane %v1339, %v1343
        %v1346 = vcombine.high %v1344, %v1344
        %v1348 = vadd.f32 %v1326, %v1344
        %v1349 = vadd.f32 %v1327, %v1346
        %v1350 = vadd.f32 %v1328, %v1344
        %v1351 = vadd.f32 %v1329, %v1346
        %v1352 = vadd.f32 %v1330, %v1344
        %v1353 = vadd.f32 %v1331, %v1346
        %v1354 = vadd.f32 %v1332, %v1344
        %v1355 = vadd.f32 %v1333, %v1346
        %v1356 = vadd.f32 %v1334, %v1344
        %v1357 = vadd.f32 %v1335, %v1346
        %v1358 = vadd.f32 %v1336, %v1344
        %v1359 = vadd.f32 %v1337, %v1346
        %v1372 = vcombine.low %v1348, %v1349
        %v1373 = vcombine.low %v1350, %v1351
        %v1374 = vcombine.low %v1352, %v1353
        %v1375 = vcombine.low %v1354, %v1355
        %v1376 = vcombine.low %v1356, %v1357
        %v1377 = vcombine.low %v1358, %v1359
        %v1384 = vpack.c.bf16 %v1373, %v1372
        %v1385 = vpack.c.bf16 %v1375, %v1374
        %v1386 = vpack.c.bf16 %v1377, %v1376
        %s1387 = scalar_lea.vmem %s3, 16
        %v1388 = vld [vmem:[%s1387] sm:$0xf]
        %v1389 = vld [vmem:[%s1387 + $0x4] sm:$0xf]
        %v1392 = vunpack.c.l.b16 %v1388
        %v1393 = vunpack.c.l.b16 %v1389
        %v1394 = vpack.c.b16 %v1393, %v1392
        %v1397 = vsel %vm306, %v1384, 0
        %v1400 = vsel %vm306, %v1385, 0
        %v1403 = vsel %vm306, %v1386, 0
        %1405 = vmatprep.subr.bf16.mxu0 0
        %1406 = vmatpush1.bf16.msra.mxu0 %v1394
        %1407 = vmatprep.subr.bf16.mxu0 0
        %1408 = vmatpush1.bf16.msra.mxu0 0
        %1409 = vmatprep.subr.bf16.mxu0 0
        %1410 = vmatpush1.bf16.msra.mxu0 0
        %1411 = vmatprep.subr.bf16.mxu0 0
        %1412 = vmatpush1.bf16.msra.mxu0 0
        %1413 = vmatprep.subr.bf16.mxu0 0
        %1414 = vmatpush1.bf16.msra.mxu0 0
        %1415 = vmatprep.subr.bf16.mxu0 0
        %1416 = vmatpush1.bf16.msra.mxu0 0
        %1417 = vmatprep.subr.bf16.mxu0 0
        %1418 = vmatpush1.bf16.msra.mxu0 0
        %1419 = vmatprep.subr.bf16.mxu0 0
        %1420 = vmatpush1.bf16.msra.mxu0 0
        %1421 = vmatprep.subr.bf16.mxu0 0
        %1422 = vmatpush1.bf16.msra.mxu0 0
        %1423 = vmatprep.subr.bf16.mxu0 0
        %1424 = vmatpush1.bf16.msra.mxu0 0
        %1425 = vmatprep.subr.bf16.mxu0 0
        %1426 = vmatpush1.bf16.msra.mxu0 0
        %1427 = vmatprep.subr.bf16.mxu0 0
        %1428 = vmatpush1.bf16.msra.mxu0 0
        %1429 = vmatprep.subr.bf16.mxu0 0
        %1430 = vmatpush1.bf16.msra.mxu0 0
        %1431 = vmatprep.subr.bf16.mxu0 0
        %1432 = vmatpush1.bf16.msra.mxu0 0
        %1433 = vmatprep.subr.bf16.mxu0 0
        %1434 = vmatpush1.bf16.msra.mxu0 0
        %1435 = vmatprep.subr.bf16.mxu0 0
        %1436 = vmatpush1.bf16.msra.mxu0 0
        %1437 = vmatprep.mubr.bf16.mxu0 0
        %1438 = vmatmul.mubr.bf16.gmra.mrb[0].mxu0 %v1397
        %v1439 = vpop.f32.mrb[0].mxu0
        %v1440 = vadd.f32 0.0, %v1439
        %v1441 = vpop.f32.mrb[0].mxu0
        %v1442 = vpop.f32.mrb[0].mxu0
        %v1443 = vadd.f32 0.0, %v1442
        %v1444 = vpop.f32.mrb[0].mxu0
        %1445 = vmatprep.mubr.bf16.mxu0 0
        %1446 = vmatmul.mubr.bf16.gmra.mrb[0].mxu0 %v1400
        %v1447 = vpop.f32.mrb[0].mxu0
        %v1448 = vadd.f32 0.0, %v1447
        %v1449 = vpop.f32.mrb[0].mxu0
        %v1450 = vpop.f32.mrb[0].mxu0
        %v1451 = vadd.f32 0.0, %v1450
        %v1452 = vpop.f32.mrb[0].mxu0
        %1453 = vmatprep.mubr.bf16.mxu0 0
        %1454 = vmatmul.mubr.bf16.gmra.mrb[0].mxu0 %v1403
        %v1455 = vpop.f32.mrb[0].mxu0
        %v1456 = vadd.f32 0.0, %v1455
        %v1457 = vpop.f32.mrb[0].mxu0
        %v1458 = vpop.f32.mrb[0].mxu0
        %v1459 = vadd.f32 0.0, %v1458
        %v1460 = vpop.f32.mrb[0].mxu0
        %1461 = vdwg.mxu0
        %v1462 = vadd.f32 %v1282, %v1440
        %v1463 = vadd.f32 %v1285, %v1443
        %v1464 = vadd.f32 %v1290, %v1448
        %v1465 = vadd.f32 %v1293, %v1451
        %v1466 = vadd.f32 %v1298, %v1456
        %v1467 = vadd.f32 %v1301, %v1459
        %v1468 = vmul.f32 %v799, %v901
        %v1469 = vmul.f32 %v800, %v908
        %v1470 = vmul.f32 %v801, %v915
        %v1471 = vmul.f32 %v802, %v922
        %v1472 = vmul.f32 %v803, %v929
        %v1473 = vmul.f32 %v804, %v936
        %v1474 = vmul.f32 %v805, %v943
        %v1475 = vmul.f32 %v806, %v950
        %v1476 = vmul.f32 %v807, %v957
        %v1477 = vmul.f32 %v808, %v964
        %v1478 = vmul.f32 %v809, %v971
        %v1479 = vmul.f32 %v810, %v978
        %s1480 = scalar_lea.vmem %s1, 3
        %v1481 = vld [vmem:[%s1480] sm:$0x1]
        %v1483 = vlaneseq
        %v1484 = vshrl.u32 %v1483, 7
        %v1485 = vsub.s32 0, %v1484
        %v1486 = vrot.slane %v1481, %v1485
        %v1488 = vcombine.high %v1486, %v1486
        %v1490 = vmul.f32 %v1468, %v1486
        %v1491 = vmul.f32 %v1469, %v1488
        %v1492 = vmul.f32 %v1470, %v1486
        %v1493 = vmul.f32 %v1471, %v1488
        %v1494 = vmul.f32 %v1472, %v1486
        %v1495 = vmul.f32 %v1473, %v1488
        %v1496 = vmul.f32 %v1474, %v1486
        %v1497 = vmul.f32 %v1475, %v1488
        %v1498 = vmul.f32 %v1476, %v1486
        %v1499 = vmul.f32 %v1477, %v1488
        %v1500 = vmul.f32 %v1478, %v1486
        %v1501 = vmul.f32 %v1479, %v1488
        %s1502 = scalar_lea.vmem %s2, 3
        %v1503 = vld [vmem:[%s1502] sm:$0x1]
        %v1505 = vlaneseq
        %v1506 = vshrl.u32 %v1505, 7
        %v1507 = vsub.s32 0, %v1506
        %v1508 = vrot.slane %v1503, %v1507
        %v1510 = vcombine.high %v1508, %v1508
        %v1512 = vadd.f32 %v1490, %v1508
        %v1513 = vadd.f32 %v1491, %v1510
        %v1514 = vadd.f32 %v1492, %v1508
        %v1515 = vadd.f32 %v1493, %v1510
        %v1516 = vadd.f32 %v1494, %v1508
        %v1517 = vadd.f32 %v1495, %v1510
        %v1518 = vadd.f32 %v1496, %v1508
        %v1519 = vadd.f32 %v1497, %v1510
        %v1520 = vadd.f32 %v1498, %v1508
        %v1521 = vadd.f32 %v1499, %v1510
        %v1522 = vadd.f32 %v1500, %v1508
        %v1523 = vadd.f32 %v1501, %v1510
        %v1536 = vcombine.low %v1512, %v1513
        %v1537 = vcombine.low %v1514, %v1515
        %v1538 = vcombine.low %v1516, %v1517
        %v1539 = vcombine.low %v1518, %v1519
        %v1540 = vcombine.low %v1520, %v1521
        %v1541 = vcombine.low %v1522, %v1523
        %v1548 = vpack.c.bf16 %v1537, %v1536
        %v1549 = vpack.c.bf16 %v1539, %v1538
        %v1550 = vpack.c.bf16 %v1541, %v1540
        %s1551 = scalar_lea.vmem %s3, 24
        %v1552 = vld [vmem:[%s1551] sm:$0xf]
        %v1553 = vld [vmem:[%s1551 + $0x4] sm:$0xf]
        %v1556 = vunpack.c.l.b16 %v1552
        %v1557 = vunpack.c.l.b16 %v1553
        %v1558 = vpack.c.b16 %v1557, %v1556
        %v1561 = vsel %vm306, %v1548, 0
        %v1564 = vsel %vm306, %v1549, 0
        %v1567 = vsel %vm306, %v1550, 0
        %1569 = vmatprep.subr.bf16.mxu0 0
        %1570 = vmatpush1.bf16.msra.mxu0 %v1558
        %1571 = vmatprep.subr.bf16.mxu0 0
        %1572 = vmatpush1.bf16.msra.mxu0 0
        %1573 = vmatprep.subr.bf16.mxu0 0
        %1574 = vmatpush1.bf16.msra.mxu0 0
        %1575 = vmatprep.subr.bf16.mxu0 0
        %1576 = vmatpush1.bf16.msra.mxu0 0
        %1577 = vmatprep.subr.bf16.mxu0 0
        %1578 = vmatpush1.bf16.msra.mxu0 0
        %1579 = vmatprep.subr.bf16.mxu0 0
        %1580 = vmatpush1.bf16.msra.mxu0 0
        %1581 = vmatprep.subr.bf16.mxu0 0
        %1582 = vmatpush1.bf16.msra.mxu0 0
        %1583 = vmatprep.subr.bf16.mxu0 0
        %1584 = vmatpush1.bf16.msra.mxu0 0
        %1585 = vmatprep.subr.bf16.mxu0 0
        %1586 = vmatpush1.bf16.msra.mxu0 0
        %1587 = vmatprep.subr.bf16.mxu0 0
        %1588 = vmatpush1.bf16.msra.mxu0 0
        %1589 = vmatprep.subr.bf16.mxu0 0
        %1590 = vmatpush1.bf16.msra.mxu0 0
        %1591 = vmatprep.subr.bf16.mxu0 0
        %1592 = vmatpush1.bf16.msra.mxu0 0
        %1593 = vmatprep.subr.bf16.mxu0 0
        %1594 = vmatpush1.bf16.msra.mxu0 0
        %1595 = vmatprep.subr.bf16.mxu0 0
        %1596 = vmatpush1.bf16.msra.mxu0 0
        %1597 = vmatprep.subr.bf16.mxu0 0
        %1598 = vmatpush1.bf16.msra.mxu0 0
        %1599 = vmatprep.subr.bf16.mxu0 0
        %1600 = vmatpush1.bf16.msra.mxu0 0
        %1601 = vmatprep.mubr.bf16.mxu0 0
        %1602 = vmatmul.mubr.bf16.gmra.mrb[0].mxu0 %v1561
        %v1603 = vpop.f32.mrb[0].mxu0
        %v1604 = vadd.f32 0.0, %v1603
        %v1605 = vpop.f32.mrb[0].mxu0
        %v1606 = vpop.f32.mrb[0].mxu0
        %v1607 = vadd.f32 0.0, %v1606
        %v1608 = vpop.f32.mrb[0].mxu0
        %1609 = vmatprep.mubr.bf16.mxu0 0
        %1610 = vmatmul.mubr.bf16.gmra.mrb[0].mxu0 %v1564
        %v1611 = vpop.f32.mrb[0].mxu0
        %v1612 = vadd.f32 0.0, %v1611
        %v1613 = vpop.f32.mrb[0].mxu0
        %v1614 = vpop.f32.mrb[0].mxu0
        %v1615 = vadd.f32 0.0, %v1614
        %v1616 = vpop.f32.mrb[0].mxu0
        %1617 = vmatprep.mubr.bf16.mxu0 0
        %1618 = vmatmul.mubr.bf16.gmra.mrb[0].mxu0 %v1567
        %v1619 = vpop.f32.mrb[0].mxu0
        %v1620 = vadd.f32 0.0, %v1619
        %v1621 = vpop.f32.mrb[0].mxu0
        %v1622 = vpop.f32.mrb[0].mxu0
        %v1623 = vadd.f32 0.0, %v1622
        %v1624 = vpop.f32.mrb[0].mxu0
        %1625 = vdwg.mxu0
        %v1626 = vadd.f32 %v1462, %v1604
        %v1627 = vadd.f32 %v1463, %v1607
        %v1628 = vadd.f32 %v1464, %v1612
        %v1629 = vadd.f32 %v1465, %v1615
        %v1630 = vadd.f32 %v1466, %v1620
        %v1631 = vadd.f32 %v1467, %v1623
        %v1638 = vcombine.high %v1626, %v1626
        %v1639 = vcombine.high %v1627, %v1627
        %v1640 = vcombine.high %v1628, %v1628
        %v1641 = vcombine.high %v1629, %v1629
        %v1642 = vcombine.high %v1630, %v1630
        %v1643 = vcombine.high %v1631, %v1631
        %vm1650 = vcmask 125952
        %1651 = vst.msk [vmem:[%s218] sm:$0xf] %vm1650, %v1626
        %1652 = vst.msk [vmem:[%s218 + $0x4] sm:$0xf] %vm1650, %v1638
        %1653 = vst.msk [vmem:[%s218 + $0x8] sm:$0xf] %vm1650, %v1627
        %1654 = vst.msk [vmem:[%s218 + $0xc] sm:$0xf] %vm1650, %v1639
        %1655 = vst.msk [vmem:[%s218 + $0x10] sm:$0xf] %vm1650, %v1628
        %1656 = vst.msk [vmem:[%s218 + $0x14] sm:$0xf] %vm1650, %v1640
        %1657 = vst.msk [vmem:[%s218 + $0x18] sm:$0xf] %vm1650, %v1629
        %1658 = vst.msk [vmem:[%s218 + $0x1c] sm:$0xf] %vm1650, %v1641
        %1659 = vst.msk [vmem:[%s218 + $0x20] sm:$0xf] %vm1650, %v1630
        %1660 = vst.msk [vmem:[%s218 + $0x24] sm:$0xf] %vm1650, %v1642
        %1661 = vst.msk [vmem:[%s218 + $0x28] sm:$0xf] %vm1650, %v1631
        %1662 = vst.msk [vmem:[%s218 + $0x2c] sm:$0xf] %vm1650, %v1643
        %s1663 = sand.u32 %s131, 1
        %s1664 = scalar_lea.sflag [#allocation3], %s1663
        %s1665 = sand.u32 %s131, 1
        %s1666 = smul.addr %s1665, 48
        %s1667 = scalar_lea.vmem [#allocation2], %s1666
        // Predicated region
        $region37: #{patch_merging_3d.1} parent=35 // pred_check
          %p1668 = pneg %p141
        $region38: #{patch_merging_3d.1} parent=35 // pred_check_branch
          %1670 = sbr.rel (%p1668) target = $region40
        $region39: #{patch_merging_3d.1} parent=35 // pred_region
          %s1671 = smul.u32 3, %s22
          %s1672 = smul.u32 4, %s23
          %s1674 = ssub.s32 768, 768
          %1675 = vsyncadd %s1664, %s1674
          %s1676 = smul.addr %s1671, 4
          %s1677 = sadd.s32 %s1672, %s1676
          %s1678 = smul.addr %s1677, 64
          %s1679 = scalar_lea.hbm %s4, %s1678
          %s1680 = sshll.u32 %s1667, 4
          %s1681 = int_to_ptr.vmem [resolvable:$true] %s1680
          %1686 = dma.vmem_to_hbm [thread:$0]  %s1681, 768, %s1679, %s1664, 64, 64, 4
        $region40: #{patch_merging_3d.1} parent=35 // pred_fallthru
          _
      $region36: #{patch_merging_3d.1} parent=5 // pred_fallthru
        _
      %p1687 = scmp.le.s32.totalorder 2, %s13
      // Predicated region
      $region41: #{patch_merging_3d.1} parent=5 // pred_check
        %p1688 = pneg %p1687
      $region42: #{patch_merging_3d.1} parent=5 // pred_check_branch
        %1690 = sbr.rel (%p1688) target = $region44
      $region43: #{patch_merging_3d.1} parent=5 // pred_region
        %s1691 = ssub.s32 %s13, 2
        // Predicated region
        $region45: #{patch_merging_3d.1} parent=43 // pred_check
          %p1692 = pneg %p147
        $region46: #{patch_merging_3d.1} parent=43 // pred_check_branch
          %1694 = sbr.rel (%p1692) target = $region48
        $region47: #{patch_merging_3d.1} parent=43 // pred_region
          %s1695 = sand.u32 %s132, 1
          %s1696 = scalar_lea.sflag [#allocation3], %s1695
          %s1697 = sand.u32 %s132, 1
          %s1698 = smul.addr %s1697, 48
          %s1699 = scalar_lea.vmem [#allocation2], %s1698
          %1700 = dma.done %s1696, 768
        $region48: #{patch_merging_3d.1} parent=43 // pred_fallthru
          _
      $region44: #{patch_merging_3d.1} parent=5 // pred_fallthru
        _
    $region6: #{patch_merging_3d.1} parent=1 // loop_footer
      %s17 = sadd.s32 1, %s13
    $region7: #{patch_merging_3d.1} parent=1 // loop_footer_branch
      %12 = sbr.rel target = $region3
    $region8: #{patch_merging_3d.1} parent=1 // loop_exit
      _
    %1701 = vsyncpa [#allocation3], 1
    %s1702 = scalar_lea.sflag [#allocation3], 1
    %1703 = vsyncpa %s1702, 1

</llo_original>
